<compile_context>
chip_gen: v7x
topology: tpu7x:2x2x1
jax: 0.10.0
libtpu: 0.0.40
codegen_flags: <defaults>
</compile_context>

<pallas_src>
import functools

import jax
import jax.numpy as jnp
from jax.experimental import pallas as pl
from jax.experimental.pallas import tpu as pltpu


def _round_up(x, m):
    return ((x + m - 1) // m) * m


# --------------------------------------------------------------------------- #
# Kernel 1: sequential GRU recurrence (input projection already precomputed).  #
# --------------------------------------------------------------------------- #
def _gru_recurrence_kernel(gx_ref, h0_ref, whh_ref, bhn_ref,
                           hs_ref, h_scratch, *, t_blk, h_pad):
    """Grid axis 0 = time blocks (strictly sequential, 'arbitrary').

    gx_ref : (t_blk, B, 3*h_pad) f32  precomputed x@W_ih + biases, gates r|z|n
    whh_ref: (h_pad, 3*h_pad)    bf16 fused hidden->gates weight
    hs_ref : (t_blk, B, h_pad)   f32  per-step hidden states (output)
    """
    @pl.when(pl.program_id(0) == 0)
    def _():
        h_scratch[...] = h0_ref[...]

    h = h_scratch[...]                                   # (B, h_pad) f32 carry
    w = whh_ref[...]                                     # bf16, read once
    bhn = jnp.broadcast_to(bhn_ref[...], h.shape)        # hoisted broadcast

    for i in range(t_blk):                               # static unroll (small)
        # One fused MXU matmul per timestep on the serial critical path.
        gh = jnp.dot(h.astype(jnp.bfloat16), w,
                     preferred_element_type=jnp.float32)  # (B, 3*h_pad)
        gx = gx_ref[i]
        # PyTorch GRU gate math (order r, z, n); b_ih and b_hh_{r,z} are folded
        # into gx, b_hh_n must stay inside r*(.).  Slices are 128-lane aligned.
        r = jax.nn.sigmoid(gx[:, :h_pad] + gh[:, :h_pad])
        z = jax.nn.sigmoid(gx[:, h_pad:2 * h_pad] + gh[:, h_pad:2 * h_pad])
        n = jnp.tanh(gx[:, 2 * h_pad:] + r * (gh[:, 2 * h_pad:] + bhn))
        h = n + z * (h - n)                              # == (1-z)*n + z*h
        hs_ref[i] = h
    h_scratch[...] = h


# --------------------------------------------------------------------------- #
# Kernel 2a: output-head matmul, tiled over rows and vocab, running LSE.       #
# --------------------------------------------------------------------------- #
def _head_matmul_kernel(h_ref, w_ref, b_ref, y_ref, lse_ref, m_sc, l_sc,
                        *, tile_d, d_valid, d_pad):
    j = pl.program_id(1)

    @pl.when(j == 0)
    def _():
        m_sc[...] = jnp.full_like(m_sc, -jnp.inf)
        l_sc[...] = jnp.zeros_like(l_sc)

    y = jnp.dot(h_ref[...].astype(jnp.bfloat16), w_ref[...],
                preferred_element_type=jnp.float32)
    y = jnp.maximum(y + b_ref[...], 0.0)                 # Linear -> ReLU
    if d_valid != d_pad:                                 # static: mask pad lanes
        col = j * tile_d + jax.lax.broadcasted_iota(jnp.int32, y.shape, 1)
        y = jnp.where(col < d_valid, y, -1e30)
    y_ref[...] = y

    # Online (flash-style) max / sum-exp for the log-softmax denominator.
    m_prev = m_sc[...]
    m_new = jnp.maximum(m_prev, jnp.max(y, axis=-1, keepdims=True))
    l_sc[...] = (l_sc[...] * jnp.exp(m_prev - m_new)
                 + jnp.sum(jnp.exp(y - m_new), axis=-1, keepdims=True))
    m_sc[...] = m_new

    @pl.when(j == pl.num_programs(1) - 1)
    def _():
        lse_ref[...] = m_sc[...] + jnp.log(l_sc[...])


# --------------------------------------------------------------------------- #
# Kernel 2b: normalization pass  log_softmax = y - lse  (lane-dense stores).   #
# --------------------------------------------------------------------------- #
def _head_normalize_kernel(y_ref, lse_ref, out_ref):
    out_ref[...] = y_ref[...] - lse_ref[...]


# --------------------------------------------------------------------------- #
# Wrapper mirroring Decoder.forward(x, hidden).                                #
# --------------------------------------------------------------------------- #
def decoder_forward(x_tokens, hidden, params, *, t_blk=16, tile_m=256, tile_d=512):
    """x_tokens: (B, S) int32; hidden: (1, B, H) f32.
    Returns (log_probs (B, S, D), hidden (1, B, H))."""
    emb = params["embedding"]            # (dict_size, E)
    w_ih = params["w_ih"]                # (E, 3H)
    w_hh = params["w_hh"]                # (H, 3H)
    b_ih = params["b_ih"]                # (1, 3H)
    b_hh = params["b_hh"]                # (1, 3H)
    w_out = params["w_out"]              # (H, D)
    b_out = params["b_out"]              # (1, D)

    B, S = x_tokens.shape
    H = w_hh.shape[0]
    D = w_out.shape[1]
    f32 = jnp.float32

    # ---- Lane/sublane-aligned padded sizes (lane-dense 128, sublane 8). ---- #
    H_pad = _round_up(H, 128)
    D_pad = _round_up(D, 128)
    B_pad = _round_up(B, 8)

    # ---- Padded / fused parameters (zero padding; padded h lanes stay 0). --- #
    def pad_gate_cols(w):                # (..., 3H) -> (..., 3*H_pad), gates r|z|n
        parts = []
        for g in range(3):
            blk = w[..., g * H:(g + 1) * H]
            widths = [(0, 0)] * (w.ndim - 1) + [(0, H_pad - H)]
            parts.append(jnp.pad(blk, widths))
        return jnp.concatenate(parts, axis=-1)

    w_ih_p = pad_gate_cols(w_ih)                                        # (E, 3H_pad)
    w_hh_p = jnp.pad(pad_gate_cols(w_hh),
                     ((0, H_pad - H), (0, 0))).astype(jnp.bfloat16)     # (H_pad, 3H_pad)
    # b_hh for the r/z gates commutes into gx; b_hh_n must stay inside r*(.).
    b_gx_p = pad_gate_cols(
        b_ih + jnp.concatenate([b_hh[:, :2 * H], jnp.zeros((1, H), f32)], axis=-1))
    bhn_p = jnp.pad(b_hh[:, 2 * H:], ((0, 0), (0, H_pad - H)))          # (1, H_pad)
    w_out_p = jnp.pad(w_out, ((0, H_pad - H), (0, D_pad - D))).astype(jnp.bfloat16)
    b_out_p = jnp.pad(b_out, ((0, 0), (0, D_pad - D))).astype(f32)
    h0_p = jnp.pad(hidden[0].astype(f32), ((0, B_pad - B), (0, H_pad - H)))

    # ---- Glue: embedding gather + batched input projection (hoisted). ------ #
    x_emb = jnp.pad(emb[x_tokens], ((0, B_pad - B), (0, 0), (0, 0)))    # (B_pad,S,E)
    x_tm = jnp.transpose(x_emb, (1, 0, 2))                              # (S,B_pad,E)
    gx = jnp.einsum("sbe,eg->sbg", x_tm, w_ih_p) + b_gx_p               # (S,B_pad,3H_pad)

    t_blk = max(1, min(t_blk, S))
    S_pad = _round_up(S, t_blk)
    if S_pad != S:
        gx = jnp.pad(gx, ((0, S_pad - S), (0, 0), (0, 0)))

    # ---- Kernel 1: sequential recurrence over time blocks. ----------------- #
    rec_kernel = functools.partial(_gru_recurrence_kernel, t_blk=t_blk, h_pad=H_pad)
    hs_tm = pl.pallas_call(
        rec_kernel,
        out_shape=jax.ShapeDtypeStruct((S_pad, B_pad, H_pad), f32),
        grid_spec=pltpu.PrefetchScalarGridSpec(
            num_scalar_prefetch=0,
            grid=(S_pad // t_blk,),
            in_specs=[
                pl.BlockSpec((t_blk, B_pad, 3 * H_pad), lambda t: (t, 0, 0)),  # gx fused
                pl.BlockSpec((B_pad, H_pad), lambda t: (0, 0)),                # h0
                pl.BlockSpec((H_pad, 3 * H_pad), lambda t: (0, 0)),            # W_hh fused
                pl.BlockSpec((1, H_pad), lambda t: (0, 0)),                    # b_hh_n
            ],
            out_specs=pl.BlockSpec((t_blk, B_pad, H_pad), lambda t: (t, 0, 0)),
            scratch_shapes=[pltpu.VMEM((B_pad, H_pad), f32)],                  # carried h
        ),
        compiler_params=pltpu.CompilerParams(
            dimension_semantics=("arbitrary",),          # strictly sequential
            vmem_limit_bytes=64 * 1024 * 1024,
        ),
    )(gx, h0_p, w_hh_p, bhn_p)

    h_final = hs_tm[S - 1, :B, :H]                       # (B, H) last valid step

    # ---- Output head over batch-major rows (lands directly in (B,S,D)). ---- #
    hs_bm = jnp.transpose(hs_tm[:S, :B], (1, 0, 2))      # small (B, S, H_pad) transpose
    n_rows = B * S
    hs_flat = hs_bm.reshape(n_rows, H_pad)

    tile_m = min(tile_m, _round_up(n_rows, 8))
    n_rows_pad = _round_up(n_rows, tile_m)
    if n_rows_pad != n_rows:
        hs_flat = jnp.pad(hs_flat, ((0, n_rows_pad - n_rows), (0, 0)))

    tile_d = min(tile_d, D_pad)
    while D_pad % tile_d:                                # keep tile_d a 128-multiple divisor
        tile_d -= 128
    n_d = D_pad // tile_d
    grid_rows = n_rows_pad // tile_m

    head_kernel = functools.partial(_head_matmul_kernel,
                                    tile_d=tile_d, d_valid=D, d_pad=D_pad)
    y_relu, lse = pl.pallas_call(
        head_kernel,
        out_shape=(jax.ShapeDtypeStruct((n_rows_pad, D_pad), f32),
                   jax.ShapeDtypeStruct((n_rows_pad, 1), f32)),
        grid_spec=pltpu.PrefetchScalarGridSpec(
            num_scalar_prefetch=0,
            grid=(grid_rows, n_d),
            in_specs=[
                pl.BlockSpec((tile_m, H_pad), lambda i, j: (i, 0)),    # hidden rows
                pl.BlockSpec((H_pad, tile_d), lambda i, j: (0, j)),    # W_out tile
                pl.BlockSpec((1, tile_d), lambda i, j: (0, j)),        # b_out tile
            ],
            out_specs=[
                pl.BlockSpec((tile_m, tile_d), lambda i, j: (i, j)),   # relu(linear)
                pl.BlockSpec((tile_m, 1), lambda i, j: (i, 0)),        # log-sum-exp
            ],
            scratch_shapes=[pltpu.VMEM((tile_m, 1), f32),              # running max
                            pltpu.VMEM((tile_m, 1), f32)],             # running sum-exp
        ),
        compiler_params=pltpu.CompilerParams(
            dimension_semantics=("parallel", "arbitrary"),
            vmem_limit_bytes=64 * 1024 * 1024,
        ),
    )(hs_flat, w_out_p, b_out_p)

    log_probs_flat = pl.pallas_call(
        _head_normalize_kernel,
        out_shape=jax.ShapeDtypeStruct((n_rows_pad, D_pad), f32),
        grid_spec=pltpu.PrefetchScalarGridSpec(
            num_scalar_prefetch=0,
            grid=(grid_rows, n_d),
            in_specs=[
                pl.BlockSpec((tile_m, tile_d), lambda i, j: (i, j)),
                pl.BlockSpec((tile_m, 1), lambda i, j: (i, 0)),
            ],
            out_specs=pl.BlockSpec((tile_m, tile_d), lambda i, j: (i, j)),
        ),
        compiler_params=pltpu.CompilerParams(
            dimension_semantics=("parallel", "parallel"),
            vmem_limit_bytes=64 * 1024 * 1024,
        ),
    )(y_relu, lse)

    log_probs = log_probs_flat[:n_rows, :D].reshape(B, S, D)
    return log_probs, h_final[None]                      # hidden back to (1, B, H)


# --------------------------------------------------------------------------- #
# Pure-JAX f32 reference mirroring PyTorch semantics (sanity check).           #
# --------------------------------------------------------------------------- #
def _reference_forward(x_tokens, hidden, params):
    emb = params["embedding"]
    H = params["w_hh"].shape[0]
    x_emb = emb[x_tokens]                # (B, S, E)
    h = hidden[0]

    def step(h, x_t):
        gx = x_t @ params["w_ih"] + params["b_ih"]
        gh = h @ params["w_hh"] + params["b_hh"]
        r = jax.nn.sigmoid(gx[:, :H] + gh[:, :H])
        z = jax.nn.sigmoid(gx[:, H:2 * H] + gh[:, H:2 * H])
        n = jnp.tanh(gx[:, 2 * H:] + r * gh[:, 2 * H:])
        h_new = (1.0 - z) * n + z * h
        return h_new, h_new

    h_final, hs = jax.lax.scan(step, h, jnp.transpose(x_emb, (1, 0, 2)))
    hs = jnp.transpose(hs, (1, 0, 2))    # (B, S, H)
    y = jnp.maximum(hs @ params["w_out"] + params["b_out"], 0.0)
    lp = jax.nn.log_softmax(y, axis=-1)
    return lp, h_final[None]


def init_params(key, hidden_size, emb_size, dict_size):
    ks = jax.random.split(key, 7)
    scale = 0.1
    return {
        "embedding": scale * jax.random.normal(ks[0], (dict_size, emb_size), jnp.float32),
        # Stored transposed relative to PyTorch (in_features, 3*hidden) for x @ W.
        "w_ih": scale * jax.random.normal(ks[1], (emb_size, 3 * hidden_size), jnp.float32),
        "w_hh": scale * jax.random.normal(ks[2], (hidden_size, 3 * hidden_size), jnp.float32),
        "b_ih": scale * jax.random.normal(ks[3], (1, 3 * hidden_size), jnp.float32),
        "b_hh": scale * jax.random.normal(ks[4], (1, 3 * hidden_size), jnp.float32),
        "w_out": scale * jax.random.normal(ks[5], (hidden_size, dict_size), jnp.float32),
        "b_out": scale * jax.random.normal(ks[6], (1, dict_size), jnp.float32),
    }


if __name__ == "__main__":
    B, S = 2, 8
    # DICT=200 pads the vocab to 256 -> with tile_d=128 the D-tiled running
    # log-softmax path (2 vocab tiles + pad-lane masking) is actually exercised.
    EMB, HID, DICT = 32, 32, 200

    key = jax.random.PRNGKey(0)
    k_par, k_tok, k_hid = jax.random.split(key, 3)

    params = init_params(k_par, HID, EMB, DICT)
    x_tokens = jax.random.randint(k_tok, (B, S), 0, DICT, dtype=jnp.int32)
    hidden0 = 0.1 * jax.random.normal(k_hid, (1, B, HID), jnp.float32)

    log_probs, h_final = decoder_forward(x_tokens, hidden0, params, tile_d=128)
    log_probs = jax.block_until_ready(log_probs)
    h_final = jax.block_until_ready(h_final)

    lp_ref, h_ref = _reference_forward(x_tokens, hidden0, params)
    assert log_probs.shape == (B, S, DICT)
    assert h_final.shape == (1, B, HID)
    # bf16 matmul weights -> loosened (but still bug-catching) tolerances.
    assert jnp.max(jnp.abs(log_probs - lp_ref)) < 5e-2
    assert jnp.max(jnp.abs(h_final - h_ref)) < 3e-2

    print("KERNEL_OK")
</pallas_src>

<mosaic_0001>
module attributes {stable_mosaic.version = 11 : i64} {
  func.func @_gru_recurrence_kernel(%arg0: i32, %arg1: memref<8x8x384xf32, #tpu.memory_space<vmem>>, %arg2: memref<8x128xf32, #tpu.memory_space<vmem>>, %arg3: memref<128x384xbf16, #tpu.memory_space<vmem>>, %arg4: memref<1x128xf32, #tpu.memory_space<vmem>>, %arg5: memref<8x8x128xf32, #tpu.memory_space<vmem>>, %arg6: memref<8x128xf32, #tpu.memory_space<vmem>>) attributes {dimension_semantics = [#tpu.dimension_semantics<arbitrary>], iteration_bounds = array<i64: 1>, scalar_prefetch = 0 : i64, scratch_operands = 1 : i64, tpu.core_type = #tpu.core_type<tc>, window_params = [{transform_indices = @transform_0, window_bounds = array<i64: 8, 8, 384>}, {pipeline_mode = #tpu.pipeline_mode<synchronous>, transform_indices = @transform_1, window_bounds = array<i64: 8, 128>}, {pipeline_mode = #tpu.pipeline_mode<synchronous>, transform_indices = @transform_2, window_bounds = array<i64: 128, 384>}, {pipeline_mode = #tpu.pipeline_mode<synchronous>, transform_indices = @transform_3, window_bounds = array<i64: 1, 128>}, {transform_indices = @transform_4, window_bounds = array<i64: 8, 8, 128>}]} {
    %c0_i32 = arith.constant 0 : i32
    %0 = arith.cmpi eq, %arg0, %c0_i32 : i32
    %1 = arith.extui %0 : i1 to i32
    %c0_i32_0 = arith.constant 0 : i32
    %2 = arith.cmpi ne, %1, %c0_i32_0 : i32
    scf.if %2 {
      %c0_72 = arith.constant 0 : index
      %c0_73 = arith.constant 0 : index
      %265 = vector.load %arg2[%c0_72, %c0_73] : memref<8x128xf32, #tpu.memory_space<vmem>>, vector<8x128xf32>
      %c0_74 = arith.constant 0 : index
      %c0_75 = arith.constant 0 : index
      %266 = vector.load %arg6[%c0_74, %c0_75] : memref<8x128xf32, #tpu.memory_space<vmem>>, vector<8x128xf32>
      tpu.vector_store %arg6[%c0_74, %c0_75], %265 {strides = array<i32>} : memref<8x128xf32, #tpu.memory_space<vmem>>, vector<8x128xf32>,
    } else {
    }
    %c0 = arith.constant 0 : index
    %c0_1 = arith.constant 0 : index
    %3 = vector.load %arg6[%c0, %c0_1] : memref<8x128xf32, #tpu.memory_space<vmem>>, vector<8x128xf32>
    %c0_2 = arith.constant 0 : index
    %c0_3 = arith.constant 0 : index
    %4 = vector.load %arg3[%c0_2, %c0_3] : memref<128x384xbf16, #tpu.memory_space<vmem>>, vector<128x384xbf16>
    %c0_4 = arith.constant 0 : index
    %c0_5 = arith.constant 0 : index
    %5 = vector.load %arg4[%c0_4, %c0_5] : memref<1x128xf32, #tpu.memory_space<vmem>>, vector<1x128xf32>
    %6 = vector.shape_cast %5 : vector<1x128xf32> to vector<1x128xf32>
    %7 = vector.broadcast %6 : vector<1x128xf32> to vector<8x128xf32>
    %8 = arith.truncf %3 : vector<8x128xf32> to vector<8x128xbf16>
    %cst = arith.constant dense<0.000000e+00> : vector<8x384xf32>
    %9 = tpu.matmul %8, %4, %cst {dimension_numbers = #tpu.dot_dimension_numbers<[1], [0], [0], [1], [0, 0, 1, 1], [], []>} : vector<8x128xbf16>, vector<128x384xbf16>, vector<8x384xf32> -> vector<8x384xf32>
    %c0_6 = arith.constant 0 : index
    %c0_7 = arith.constant 0 : index
    %c0_8 = arith.constant 0 : index
    %10 = vector.load %arg1[%c0_6, %c0_7, %c0_8] : memref<8x8x384xf32, #tpu.memory_space<vmem>>, vector<1x8x384xf32>
    %11 = vector.shape_cast %10 : vector<1x8x384xf32> to vector<8x384xf32>
    %12 = vector.extract_strided_slice %11 {offsets = [0, 0], sizes = [8, 128], strides = [1, 1]} : vector<8x384xf32> to vector<8x128xf32>
    %13 = vector.extract_strided_slice %9 {offsets = [0, 0], sizes = [8, 128], strides = [1, 1]} : vector<8x384xf32> to vector<8x128xf32>
    %14 = arith.addf %12, %13 : vector<8x128xf32>
    %15 = arith.negf %14 : vector<8x128xf32>
    %16 = math.exp %15 : vector<8x128xf32>
    %cst_9 = arith.constant 1.000000e+00 : f32
    %17 = vector.broadcast %cst_9 : f32 to vector<8x128xf32>
    %18 = arith.addf %17, %16 : vector<8x128xf32>
    %19 = arith.divf %17, %18 : vector<8x128xf32>
    %20 = vector.extract_strided_slice %11 {offsets = [0, 128], sizes = [8, 128], strides = [1, 1]} : vector<8x384xf32> to vector<8x128xf32>
    %21 = vector.extract_strided_slice %9 {offsets = [0, 128], sizes = [8, 128], strides = [1, 1]} : vector<8x384xf32> to vector<8x128xf32>
    %22 = arith.addf %20, %21 : vector<8x128xf32>
    %23 = arith.negf %22 : vector<8x128xf32>
    %24 = math.exp %23 : vector<8x128xf32>
    %cst_10 = arith.constant 1.000000e+00 : f32
    %25 = vector.broadcast %cst_10 : f32 to vector<8x128xf32>
    %26 = arith.addf %25, %24 : vector<8x128xf32>
    %27 = arith.divf %25, %26 : vector<8x128xf32>
    %28 = vector.extract_strided_slice %11 {offsets = [0, 256], sizes = [8, 128], strides = [1, 1]} : vector<8x384xf32> to vector<8x128xf32>
    %29 = vector.extract_strided_slice %9 {offsets = [0, 256], sizes = [8, 128], strides = [1, 1]} : vector<8x384xf32> to vector<8x128xf32>
    %30 = arith.addf %29, %7 : vector<8x128xf32>
    %31 = arith.mulf %19, %30 : vector<8x128xf32>
    %32 = arith.addf %28, %31 : vector<8x128xf32>
    %33 = math.tanh %32 : vector<8x128xf32>
    %34 = arith.subf %3, %33 : vector<8x128xf32>
    %35 = arith.mulf %27, %34 : vector<8x128xf32>
    %36 = arith.addf %33, %35 : vector<8x128xf32>
    %c0_11 = arith.constant 0 : index
    %c0_12 = arith.constant 0 : index
    %c0_13 = arith.constant 0 : index
    %37 = vector.load %arg5[%c0_11, %c0_12, %c0_13] : memref<8x8x128xf32, #tpu.memory_space<vmem>>, vector<1x8x128xf32>
    %38 = vector.shape_cast %37 : vector<1x8x128xf32> to vector<8x128xf32>
    %39 = vector.shape_cast %36 : vector<8x128xf32> to vector<1x8x128xf32>
    tpu.vector_store %arg5[%c0_11, %c0_12, %c0_13], %39 {strides = array<i32>} : memref<8x8x128xf32, #tpu.memory_space<vmem>>, vector<1x8x128xf32>,
    %40 = arith.truncf %36 : vector<8x128xf32> to vector<8x128xbf16>
    %cst_14 = arith.constant dense<0.000000e+00> : vector<8x384xf32>
    %41 = tpu.matmul %40, %4, %cst_14 {dimension_numbers = #tpu.dot_dimension_numbers<[1], [0], [0], [1], [0, 0, 1, 1], [], []>} : vector<8x128xbf16>, vector<128x384xbf16>, vector<8x384xf32> -> vector<8x384xf32>
    %c1 = arith.constant 1 : index
    %c0_15 = arith.constant 0 : index
    %c0_16 = arith.constant 0 : index
    %42 = vector.load %arg1[%c1, %c0_15, %c0_16] : memref<8x8x384xf32, #tpu.memory_space<vmem>>, vector<1x8x384xf32>
    %43 = vector.shape_cast %42 : vector<1x8x384xf32> to vector<8x384xf32>
    %44 = vector.extract_strided_slice %43 {offsets = [0, 0], sizes = [8, 128], strides = [1, 1]} : vector<8x384xf32> to vector<8x128xf32>
    %45 = vector.extract_strided_slice %41 {offsets = [0, 0], sizes = [8, 128], strides = [1, 1]} : vector<8x384xf32> to vector<8x128xf32>
    %46 = arith.addf %44, %45 : vector<8x128xf32>
    %47 = arith.negf %46 : vector<8x128xf32>
    %48 = math.exp %47 : vector<8x128xf32>
    %cst_17 = arith.constant 1.000000e+00 : f32
    %49 = vector.broadcast %cst_17 : f32 to vector<8x128xf32>
    %50 = arith.addf %49, %48 : vector<8x128xf32>
    %51 = arith.divf %49, %50 : vector<8x128xf32>
    %52 = vector.extract_strided_slice %43 {offsets = [0, 128], sizes = [8, 128], strides = [1, 1]} : vector<8x384xf32> to vector<8x128xf32>
    %53 = vector.extract_strided_slice %41 {offsets = [0, 128], sizes = [8, 128], strides = [1, 1]} : vector<8x384xf32> to vector<8x128xf32>
    %54 = arith.addf %52, %53 : vector<8x128xf32>
    %55 = arith.negf %54 : vector<8x128xf32>
    %56 = math.exp %55 : vector<8x128xf32>
    %cst_18 = arith.constant 1.000000e+00 : f32
    %57 = vector.broadcast %cst_18 : f32 to vector<8x128xf32>
    %58 = arith.addf %57, %56 : vector<8x128xf32>
    %59 = arith.divf %57, %58 : vector<8x128xf32>
    %60 = vector.extract_strided_slice %43 {offsets = [0, 256], sizes = [8, 128], strides = [1, 1]} : vector<8x384xf32> to vector<8x128xf32>
    %61 = vector.extract_strided_slice %41 {offsets = [0, 256], sizes = [8, 128], strides = [1, 1]} : vector<8x384xf32> to vector<8x128xf32>
    %62 = arith.addf %61, %7 : vector<8x128xf32>
    %63 = arith.mulf %51, %62 : vector<8x128xf32>
    %64 = arith.addf %60, %63 : vector<8x128xf32>
    %65 = math.tanh %64 : vector<8x128xf32>
    %66 = arith.subf %36, %65 : vector<8x128xf32>
    %67 = arith.mulf %59, %66 : vector<8x128xf32>
    %68 = arith.addf %65, %67 : vector<8x128xf32>
    %c1_19 = arith.constant 1 : index
    %c0_20 = arith.constant 0 : index
    %c0_21 = arith.constant 0 : index
    %69 = vector.load %arg5[%c1_19, %c0_20, %c0_21] : memref<8x8x128xf32, #tpu.memory_space<vmem>>, vector<1x8x128xf32>
    %70 = vector.shape_cast %69 : vector<1x8x128xf32> to vector<8x128xf32>
    %71 = vector.shape_cast %68 : vector<8x128xf32> to vector<1x8x128xf32>
    tpu.vector_store %arg5[%c1_19, %c0_20, %c0_21], %71 {strides = array<i32>} : memref<8x8x128xf32, #tpu.memory_space<vmem>>, vector<1x8x128xf32>,
    %72 = arith.truncf %68 : vector<8x128xf32> to vector<8x128xbf16>
    %cst_22 = arith.constant dense<0.000000e+00> : vector<8x384xf32>
    %73 = tpu.matmul %72, %4, %cst_22 {dimension_numbers = #tpu.dot_dimension_numbers<[1], [0], [0], [1], [0, 0, 1, 1], [], []>} : vector<8x128xbf16>, vector<128x384xbf16>, vector<8x384xf32> -> vector<8x384xf32>
    %c2 = arith.constant 2 : index
    %c0_23 = arith.constant 0 : index
    %c0_24 = arith.constant 0 : index
    %74 = vector.load %arg1[%c2, %c0_23, %c0_24] : memref<8x8x384xf32, #tpu.memory_space<vmem>>, vector<1x8x384xf32>
    %75 = vector.shape_cast %74 : vector<1x8x384xf32> to vector<8x384xf32>
    %76 = vector.extract_strided_slice %75 {offsets = [0, 0], sizes = [8, 128], strides = [1, 1]} : vector<8x384xf32> to vector<8x128xf32>
    %77 = vector.extract_strided_slice %73 {offsets = [0, 0], sizes = [8, 128], strides = [1, 1]} : vector<8x384xf32> to vector<8x128xf32>
    %78 = arith.addf %76, %77 : vector<8x128xf32>
    %79 = arith.negf %78 : vector<8x128xf32>
    %80 = math.exp %79 : vector<8x128xf32>
    %cst_25 = arith.constant 1.000000e+00 : f32
    %81 = vector.broadcast %cst_25 : f32 to vector<8x128xf32>
    %82 = arith.addf %81, %80 : vector<8x128xf32>
    %83 = arith.divf %81, %82 : vector<8x128xf32>
    %84 = vector.extract_strided_slice %75 {offsets = [0, 128], sizes = [8, 128], strides = [1, 1]} : vector<8x384xf32> to vector<8x128xf32>
    %85 = vector.extract_strided_slice %73 {offsets = [0, 128], sizes = [8, 128], strides = [1, 1]} : vector<8x384xf32> to vector<8x128xf32>
    %86 = arith.addf %84, %85 : vector<8x128xf32>
    %87 = arith.negf %86 : vector<8x128xf32>
    %88 = math.exp %87 : vector<8x128xf32>
    %cst_26 = arith.constant 1.000000e+00 : f32
    %89 = vector.broadcast %cst_26 : f32 to vector<8x128xf32>
    %90 = arith.addf %89, %88 : vector<8x128xf32>
    %91 = arith.divf %89, %90 : vector<8x128xf32>
    %92 = vector.extract_strided_slice %75 {offsets = [0, 256], sizes = [8, 128], strides = [1, 1]} : vector<8x384xf32> to vector<8x128xf32>
    %93 = vector.extract_strided_slice %73 {offsets = [0, 256], sizes = [8, 128], strides = [1, 1]} : vector<8x384xf32> to vector<8x128xf32>
    %94 = arith.addf %93, %7 : vector<8x128xf32>
    %95 = arith.mulf %83, %94 : vector<8x128xf32>
    %96 = arith.addf %92, %95 : vector<8x128xf32>
    %97 = math.tanh %96 : vector<8x128xf32>
    %98 = arith.subf %68, %97 : vector<8x128xf32>
    %99 = arith.mulf %91, %98 : vector<8x128xf32>
    %100 = arith.addf %97, %99 : vector<8x128xf32>
    %c2_27 = arith.constant 2 : index
    %c0_28 = arith.constant 0 : index
    %c0_29 = arith.constant 0 : index
    %101 = vector.load %arg5[%c2_27, %c0_28, %c0_29] : memref<8x8x128xf32, #tpu.memory_space<vmem>>, vector<1x8x128xf32>
    %102 = vector.shape_cast %101 : vector<1x8x128xf32> to vector<8x128xf32>
    %103 = vector.shape_cast %100 : vector<8x128xf32> to vector<1x8x128xf32>
    tpu.vector_store %arg5[%c2_27, %c0_28, %c0_29], %103 {strides = array<i32>} : memref<8x8x128xf32, #tpu.memory_space<vmem>>, vector<1x8x128xf32>,
    %104 = arith.truncf %100 : vector<8x128xf32> to vector<8x128xbf16>
    %cst_30 = arith.constant dense<0.000000e+00> : vector<8x384xf32>
    %105 = tpu.matmul %104, %4, %cst_30 {dimension_numbers = #tpu.dot_dimension_numbers<[1], [0], [0], [1], [0, 0, 1, 1], [], []>} : vector<8x128xbf16>, vector<128x384xbf16>, vector<8x384xf32> -> vector<8x384xf32>
    %c3 = arith.constant 3 : index
    %c0_31 = arith.constant 0 : index
    %c0_32 = arith.constant 0 : index
    %106 = vector.load %arg1[%c3, %c0_31, %c0_32] : memref<8x8x384xf32, #tpu.memory_space<vmem>>, vector<1x8x384xf32>
    %107 = vector.shape_cast %106 : vector<1x8x384xf32> to vector<8x384xf32>
    %108 = vector.extract_strided_slice %107 {offsets = [0, 0], sizes = [8, 128], strides = [1, 1]} : vector<8x384xf32> to vector<8x128xf32>
    %109 = vector.extract_strided_slice %105 {offsets = [0, 0], sizes = [8, 128], strides = [1, 1]} : vector<8x384xf32> to vector<8x128xf32>
    %110 = arith.addf %108, %109 : vector<8x128xf32>
    %111 = arith.negf %110 : vector<8x128xf32>
    %112 = math.exp %111 : vector<8x128xf32>
    %cst_33 = arith.constant 1.000000e+00 : f32
    %113 = vector.broadcast %cst_33 : f32 to vector<8x128xf32>
    %114 = arith.addf %113, %112 : vector<8x128xf32>
    %115 = arith.divf %113, %114 : vector<8x128xf32>
    %116 = vector.extract_strided_slice %107 {offsets = [0, 128], sizes = [8, 128], strides = [1, 1]} : vector<8x384xf32> to vector<8x128xf32>
    %117 = vector.extract_strided_slice %105 {offsets = [0, 128], sizes = [8, 128], strides = [1, 1]} : vector<8x384xf32> to vector<8x128xf32>
    %118 = arith.addf %116, %117 : vector<8x128xf32>
    %119 = arith.negf %118 : vector<8x128xf32>
    %120 = math.exp %119 : vector<8x128xf32>
    %cst_34 = arith.constant 1.000000e+00 : f32
    %121 = vector.broadcast %cst_34 : f32 to vector<8x128xf32>
    %122 = arith.addf %121, %120 : vector<8x128xf32>
    %123 = arith.divf %121, %122 : vector<8x128xf32>
    %124 = vector.extract_strided_slice %107 {offsets = [0, 256], sizes = [8, 128], strides = [1, 1]} : vector<8x384xf32> to vector<8x128xf32>
    %125 = vector.extract_strided_slice %105 {offsets = [0, 256], sizes = [8, 128], strides = [1, 1]} : vector<8x384xf32> to vector<8x128xf32>
    %126 = arith.addf %125, %7 : vector<8x128xf32>
    %127 = arith.mulf %115, %126 : vector<8x128xf32>
    %128 = arith.addf %124, %127 : vector<8x128xf32>
    %129 = math.tanh %128 : vector<8x128xf32>
    %130 = arith.subf %100, %129 : vector<8x128xf32>
    %131 = arith.mulf %123, %130 : vector<8x128xf32>
    %132 = arith.addf %129, %131 : vector<8x128xf32>
    %c3_35 = arith.constant 3 : index
    %c0_36 = arith.constant 0 : index
    %c0_37 = arith.constant 0 : index
    %133 = vector.load %arg5[%c3_35, %c0_36, %c0_37] : memref<8x8x128xf32, #tpu.memory_space<vmem>>, vector<1x8x128xf32>
    %134 = vector.shape_cast %133 : vector<1x8x128xf32> to vector<8x128xf32>
    %135 = vector.shape_cast %132 : vector<8x128xf32> to vector<1x8x128xf32>
    tpu.vector_store %arg5[%c3_35, %c0_36, %c0_37], %135 {strides = array<i32>} : memref<8x8x128xf32, #tpu.memory_space<vmem>>, vector<1x8x128xf32>,
    %136 = arith.truncf %132 : vector<8x128xf32> to vector<8x128xbf16>
    %cst_38 = arith.constant dense<0.000000e+00> : vector<8x384xf32>
    %137 = tpu.matmul %136, %4, %cst_38 {dimension_numbers = #tpu.dot_dimension_numbers<[1], [0], [0], [1], [0, 0, 1, 1], [], []>} : vector<8x128xbf16>, vector<128x384xbf16>, vector<8x384xf32> -> vector<8x384xf32>
    %c4 = arith.constant 4 : index
    %c0_39 = arith.constant 0 : index
    %c0_40 = arith.constant 0 : index
    %138 = vector.load %arg1[%c4, %c0_39, %c0_40] : memref<8x8x384xf32, #tpu.memory_space<vmem>>, vector<1x8x384xf32>
    %139 = vector.shape_cast %138 : vector<1x8x384xf32> to vector<8x384xf32>
    %140 = vector.extract_strided_slice %139 {offsets = [0, 0], sizes = [8, 128], strides = [1, 1]} : vector<8x384xf32> to vector<8x128xf32>
    %141 = vector.extract_strided_slice %137 {offsets = [0, 0], sizes = [8, 128], strides = [1, 1]} : vector<8x384xf32> to vector<8x128xf32>
    %142 = arith.addf %140, %141 : vector<8x128xf32>
    %143 = arith.negf %142 : vector<8x128xf32>
    %144 = math.exp %143 : vector<8x128xf32>
    %cst_41 = arith.constant 1.000000e+00 : f32
    %145 = vector.broadcast %cst_41 : f32 to vector<8x128xf32>
    %146 = arith.addf %145, %144 : vector<8x128xf32>
    %147 = arith.divf %145, %146 : vector<8x128xf32>
    %148 = vector.extract_strided_slice %139 {offsets = [0, 128], sizes = [8, 128], strides = [1, 1]} : vector<8x384xf32> to vector<8x128xf32>
    %149 = vector.extract_strided_slice %137 {offsets = [0, 128], sizes = [8, 128], strides = [1, 1]} : vector<8x384xf32> to vector<8x128xf32>
    %150 = arith.addf %148, %149 : vector<8x128xf32>
    %151 = arith.negf %150 : vector<8x128xf32>
    %152 = math.exp %151 : vector<8x128xf32>
    %cst_42 = arith.constant 1.000000e+00 : f32
    %153 = vector.broadcast %cst_42 : f32 to vector<8x128xf32>
    %154 = arith.addf %153, %152 : vector<8x128xf32>
    %155 = arith.divf %153, %154 : vector<8x128xf32>
    %156 = vector.extract_strided_slice %139 {offsets = [0, 256], sizes = [8, 128], strides = [1, 1]} : vector<8x384xf32> to vector<8x128xf32>
    %157 = vector.extract_strided_slice %137 {offsets = [0, 256], sizes = [8, 128], strides = [1, 1]} : vector<8x384xf32> to vector<8x128xf32>
    %158 = arith.addf %157, %7 : vector<8x128xf32>
    %159 = arith.mulf %147, %158 : vector<8x128xf32>
    %160 = arith.addf %156, %159 : vector<8x128xf32>
    %161 = math.tanh %160 : vector<8x128xf32>
    %162 = arith.subf %132, %161 : vector<8x128xf32>
    %163 = arith.mulf %155, %162 : vector<8x128xf32>
    %164 = arith.addf %161, %163 : vector<8x128xf32>
    %c4_43 = arith.constant 4 : index
    %c0_44 = arith.constant 0 : index
    %c0_45 = arith.constant 0 : index
    %165 = vector.load %arg5[%c4_43, %c0_44, %c0_45] : memref<8x8x128xf32, #tpu.memory_space<vmem>>, vector<1x8x128xf32>
    %166 = vector.shape_cast %165 : vector<1x8x128xf32> to vector<8x128xf32>
    %167 = vector.shape_cast %164 : vector<8x128xf32> to vector<1x8x128xf32>
    tpu.vector_store %arg5[%c4_43, %c0_44, %c0_45], %167 {strides = array<i32>} : memref<8x8x128xf32, #tpu.memory_space<vmem>>, vector<1x8x128xf32>,
    %168 = arith.truncf %164 : vector<8x128xf32> to vector<8x128xbf16>
    %cst_46 = arith.constant dense<0.000000e+00> : vector<8x384xf32>
    %169 = tpu.matmul %168, %4, %cst_46 {dimension_numbers = #tpu.dot_dimension_numbers<[1], [0], [0], [1], [0, 0, 1, 1], [], []>} : vector<8x128xbf16>, vector<128x384xbf16>, vector<8x384xf32> -> vector<8x384xf32>
    %c5 = arith.constant 5 : index
    %c0_47 = arith.constant 0 : index
    %c0_48 = arith.constant 0 : index
    %170 = vector.load %arg1[%c5, %c0_47, %c0_48] : memref<8x8x384xf32, #tpu.memory_space<vmem>>, vector<1x8x384xf32>
    %171 = vector.shape_cast %170 : vector<1x8x384xf32> to vector<8x384xf32>
    %172 = vector.extract_strided_slice %171 {offsets = [0, 0], sizes = [8, 128], strides = [1, 1]} : vector<8x384xf32> to vector<8x128xf32>
    %173 = vector.extract_strided_slice %169 {offsets = [0, 0], sizes = [8, 128], strides = [1, 1]} : vector<8x384xf32> to vector<8x128xf32>
    %174 = arith.addf %172, %173 : vector<8x128xf32>
    %175 = arith.negf %174 : vector<8x128xf32>
    %176 = math.exp %175 : vector<8x128xf32>
    %cst_49 = arith.constant 1.000000e+00 : f32
    %177 = vector.broadcast %cst_49 : f32 to vector<8x128xf32>
    %178 = arith.addf %177, %176 : vector<8x128xf32>
    %179 = arith.divf %177, %178 : vector<8x128xf32>
    %180 = vector.extract_strided_slice %171 {offsets = [0, 128], sizes = [8, 128], strides = [1, 1]} : vector<8x384xf32> to vector<8x128xf32>
    %181 = vector.extract_strided_slice %169 {offsets = [0, 128], sizes = [8, 128], strides = [1, 1]} : vector<8x384xf32> to vector<8x128xf32>
    %182 = arith.addf %180, %181 : vector<8x128xf32>
    %183 = arith.negf %182 : vector<8x128xf32>
    %184 = math.exp %183 : vector<8x128xf32>
    %cst_50 = arith.constant 1.000000e+00 : f32
    %185 = vector.broadcast %cst_50 : f32 to vector<8x128xf32>
    %186 = arith.addf %185, %184 : vector<8x128xf32>
    %187 = arith.divf %185, %186 : vector<8x128xf32>
    %188 = vector.extract_strided_slice %171 {offsets = [0, 256], sizes = [8, 128], strides = [1, 1]} : vector<8x384xf32> to vector<8x128xf32>
    %189 = vector.extract_strided_slice %169 {offsets = [0, 256], sizes = [8, 128], strides = [1, 1]} : vector<8x384xf32> to vector<8x128xf32>
    %190 = arith.addf %189, %7 : vector<8x128xf32>
    %191 = arith.mulf %179, %190 : vector<8x128xf32>
    %192 = arith.addf %188, %191 : vector<8x128xf32>
    %193 = math.tanh %192 : vector<8x128xf32>
    %194 = arith.subf %164, %193 : vector<8x128xf32>
    %195 = arith.mulf %187, %194 : vector<8x128xf32>
    %196 = arith.addf %193, %195 : vector<8x128xf32>
    %c5_51 = arith.constant 5 : index
    %c0_52 = arith.constant 0 : index
    %c0_53 = arith.constant 0 : index
    %197 = vector.load %arg5[%c5_51, %c0_52, %c0_53] : memref<8x8x128xf32, #tpu.memory_space<vmem>>, vector<1x8x128xf32>
    %198 = vector.shape_cast %197 : vector<1x8x128xf32> to vector<8x128xf32>
    %199 = vector.shape_cast %196 : vector<8x128xf32> to vector<1x8x128xf32>
    tpu.vector_store %arg5[%c5_51, %c0_52, %c0_53], %199 {strides = array<i32>} : memref<8x8x128xf32, #tpu.memory_space<vmem>>, vector<1x8x128xf32>,
    %200 = arith.truncf %196 : vector<8x128xf32> to vector<8x128xbf16>
    %cst_54 = arith.constant dense<0.000000e+00> : vector<8x384xf32>
    %201 = tpu.matmul %200, %4, %cst_54 {dimension_numbers = #tpu.dot_dimension_numbers<[1], [0], [0], [1], [0, 0, 1, 1], [], []>} : vector<8x128xbf16>, vector<128x384xbf16>, vector<8x384xf32> -> vector<8x384xf32>
    %c6 = arith.constant 6 : index
    %c0_55 = arith.constant 0 : index
    %c0_56 = arith.constant 0 : index
    %202 = vector.load %arg1[%c6, %c0_55, %c0_56] : memref<8x8x384xf32, #tpu.memory_space<vmem>>, vector<1x8x384xf32>
    %203 = vector.shape_cast %202 : vector<1x8x384xf32> to vector<8x384xf32>
    %204 = vector.extract_strided_slice %203 {offsets = [0, 0], sizes = [8, 128], strides = [1, 1]} : vector<8x384xf32> to vector<8x128xf32>
    %205 = vector.extract_strided_slice %201 {offsets = [0, 0], sizes = [8, 128], strides = [1, 1]} : vector<8x384xf32> to vector<8x128xf32>
    %206 = arith.addf %204, %205 : vector<8x128xf32>
    %207 = arith.negf %206 : vector<8x128xf32>
    %208 = math.exp %207 : vector<8x128xf32>
    %cst_57 = arith.constant 1.000000e+00 : f32
    %209 = vector.broadcast %cst_57 : f32 to vector<8x128xf32>
    %210 = arith.addf %209, %208 : vector<8x128xf32>
    %211 = arith.divf %209, %210 : vector<8x128xf32>
    %212 = vector.extract_strided_slice %203 {offsets = [0, 128], sizes = [8, 128], strides = [1, 1]} : vector<8x384xf32> to vector<8x128xf32>
    %213 = vector.extract_strided_slice %201 {offsets = [0, 128], sizes = [8, 128], strides = [1, 1]} : vector<8x384xf32> to vector<8x128xf32>
    %214 = arith.addf %212, %213 : vector<8x128xf32>
    %215 = arith.negf %214 : vector<8x128xf32>
    %216 = math.exp %215 : vector<8x128xf32>
    %cst_58 = arith.constant 1.000000e+00 : f32
    %217 = vector.broadcast %cst_58 : f32 to vector<8x128xf32>
    %218 = arith.addf %217, %216 : vector<8x128xf32>
    %219 = arith.divf %217, %218 : vector<8x128xf32>
    %220 = vector.extract_strided_slice %203 {offsets = [0, 256], sizes = [8, 128], strides = [1, 1]} : vector<8x384xf32> to vector<8x128xf32>
    %221 = vector.extract_strided_slice %201 {offsets = [0, 256], sizes = [8, 128], strides = [1, 1]} : vector<8x384xf32> to vector<8x128xf32>
    %222 = arith.addf %221, %7 : vector<8x128xf32>
    %223 = arith.mulf %211, %222 : vector<8x128xf32>
    %224 = arith.addf %220, %223 : vector<8x128xf32>
    %225 = math.tanh %224 : vector<8x128xf32>
    %226 = arith.subf %196, %225 : vector<8x128xf32>
    %227 = arith.mulf %219, %226 : vector<8x128xf32>
    %228 = arith.addf %225, %227 : vector<8x128xf32>
    %c6_59 = arith.constant 6 : index
    %c0_60 = arith.constant 0 : index
    %c0_61 = arith.constant 0 : index
    %229 = vector.load %arg5[%c6_59, %c0_60, %c0_61] : memref<8x8x128xf32, #tpu.memory_space<vmem>>, vector<1x8x128xf32>
    %230 = vector.shape_cast %229 : vector<1x8x128xf32> to vector<8x128xf32>
    %231 = vector.shape_cast %228 : vector<8x128xf32> to vector<1x8x128xf32>
    tpu.vector_store %arg5[%c6_59, %c0_60, %c0_61], %231 {strides = array<i32>} : memref<8x8x128xf32, #tpu.memory_space<vmem>>, vector<1x8x128xf32>,
    %232 = arith.truncf %228 : vector<8x128xf32> to vector<8x128xbf16>
    %cst_62 = arith.constant dense<0.000000e+00> : vector<8x384xf32>
    %233 = tpu.matmul %232, %4, %cst_62 {dimension_numbers = #tpu.dot_dimension_numbers<[1], [0], [0], [1], [0, 0, 1, 1], [], []>} : vector<8x128xbf16>, vector<128x384xbf16>, vector<8x384xf32> -> vector<8x384xf32>
    %c7 = arith.constant 7 : index
    %c0_63 = arith.constant 0 : index
    %c0_64 = arith.constant 0 : index
    %234 = vector.load %arg1[%c7, %c0_63, %c0_64] : memref<8x8x384xf32, #tpu.memory_space<vmem>>, vector<1x8x384xf32>
    %235 = vector.shape_cast %234 : vector<1x8x384xf32> to vector<8x384xf32>
    %236 = vector.extract_strided_slice %235 {offsets = [0, 0], sizes = [8, 128], strides = [1, 1]} : vector<8x384xf32> to vector<8x128xf32>
    %237 = vector.extract_strided_slice %233 {offsets = [0, 0], sizes = [8, 128], strides = [1, 1]} : vector<8x384xf32> to vector<8x128xf32>
    %238 = arith.addf %236, %237 : vector<8x128xf32>
    %239 = arith.negf %238 : vector<8x128xf32>
    %240 = math.exp %239 : vector<8x128xf32>
    %cst_65 = arith.constant 1.000000e+00 : f32
    %241 = vector.broadcast %cst_65 : f32 to vector<8x128xf32>
    %242 = arith.addf %241, %240 : vector<8x128xf32>
    %243 = arith.divf %241, %242 : vector<8x128xf32>
    %244 = vector.extract_strided_slice %235 {offsets = [0, 128], sizes = [8, 128], strides = [1, 1]} : vector<8x384xf32> to vector<8x128xf32>
    %245 = vector.extract_strided_slice %233 {offsets = [0, 128], sizes = [8, 128], strides = [1, 1]} : vector<8x384xf32> to vector<8x128xf32>
    %246 = arith.addf %244, %245 : vector<8x128xf32>
    %247 = arith.negf %246 : vector<8x128xf32>
    %248 = math.exp %247 : vector<8x128xf32>
    %cst_66 = arith.constant 1.000000e+00 : f32
    %249 = vector.broadcast %cst_66 : f32 to vector<8x128xf32>
    %250 = arith.addf %249, %248 : vector<8x128xf32>
    %251 = arith.divf %249, %250 : vector<8x128xf32>
    %252 = vector.extract_strided_slice %235 {offsets = [0, 256], sizes = [8, 128], strides = [1, 1]} : vector<8x384xf32> to vector<8x128xf32>
    %253 = vector.extract_strided_slice %233 {offsets = [0, 256], sizes = [8, 128], strides = [1, 1]} : vector<8x384xf32> to vector<8x128xf32>
    %254 = arith.addf %253, %7 : vector<8x128xf32>
    %255 = arith.mulf %243, %254 : vector<8x128xf32>
    %256 = arith.addf %252, %255 : vector<8x128xf32>
    %257 = math.tanh %256 : vector<8x128xf32>
    %258 = arith.subf %228, %257 : vector<8x128xf32>
    %259 = arith.mulf %251, %258 : vector<8x128xf32>
    %260 = arith.addf %257, %259 : vector<8x128xf32>
    %c7_67 = arith.constant 7 : index
    %c0_68 = arith.constant 0 : index
    %c0_69 = arith.constant 0 : index
    %261 = vector.load %arg5[%c7_67, %c0_68, %c0_69] : memref<8x8x128xf32, #tpu.memory_space<vmem>>, vector<1x8x128xf32>
    %262 = vector.shape_cast %261 : vector<1x8x128xf32> to vector<8x128xf32>
    %263 = vector.shape_cast %260 : vector<8x128xf32> to vector<1x8x128xf32>
    tpu.vector_store %arg5[%c7_67, %c0_68, %c0_69], %263 {strides = array<i32>} : memref<8x8x128xf32, #tpu.memory_space<vmem>>, vector<1x8x128xf32>,
    %c0_70 = arith.constant 0 : index
    %c0_71 = arith.constant 0 : index
    %264 = vector.load %arg6[%c0_70, %c0_71] : memref<8x128xf32, #tpu.memory_space<vmem>>, vector<8x128xf32>
    tpu.vector_store %arg6[%c0_70, %c0_71], %260 {strides = array<i32>} : memref<8x128xf32, #tpu.memory_space<vmem>>, vector<8x128xf32>,
    return
  }
  func.func @transform_0(%arg0: i32) -> (i32, i32, i32) {
    %c0_i32 = arith.constant 0 : i32
    %c0_i32_0 = arith.constant 0 : i32
    %c0_i32_1 = arith.constant 0 : i32
    return %arg0, %c0_i32, %c0_i32_0 : i32, i32, i32
  }
  func.func @transform_1(%arg0: i32) -> (i32, i32) {
    %c0_i32 = arith.constant 0 : i32
    %c0_i32_0 = arith.constant 0 : i32
    %c0_i32_1 = arith.constant 0 : i32
    return %c0_i32, %c0_i32_0 : i32, i32
  }
  func.func @transform_2(%arg0: i32) -> (i32, i32) {
    %c0_i32 = arith.constant 0 : i32
    %c0_i32_0 = arith.constant 0 : i32
    %c0_i32_1 = arith.constant 0 : i32
    return %c0_i32, %c0_i32_0 : i32, i32
  }
  func.func @transform_3(%arg0: i32) -> (i32, i32) {
    %c0_i32 = arith.constant 0 : i32
    %c0_i32_0 = arith.constant 0 : i32
    %c0_i32_1 = arith.constant 0 : i32
    return %c0_i32, %c0_i32_0 : i32, i32
  }
  func.func @transform_4(%arg0: i32) -> (i32, i32, i32) {
    %c0_i32 = arith.constant 0 : i32
    %c0_i32_0 = arith.constant 0 : i32
    %c0_i32_1 = arith.constant 0 : i32
    return %arg0, %c0_i32, %c0_i32_0 : i32, i32, i32
  }
}

</mosaic_0001>

<llo_original>
// kernel: tpu_custom_call.1
$region0: #{tpu_custom_call.1}
  #allocation0 [shape = 'u32[]', space=smem, size = 0x4, offset = 0x4, fixed_abs, tag = 'smem constant byte address 0x4 - core index']
  #allocation1 [shape = 'u32[144,128]{1,0:T(1,128)}', space=vmem, size = 0x12000, scoped, tag = 'internal scratch']
  #allocation2 [shape = 'f32[8,128]{1,0:T(8,128)}', space=vmem, size = 0x1000, scoped, tag = 'scratch operand']
  %s0 = inlined_call_operand.hbm [shape: f32[8,8,384], index: 0, kind: input, shape index: {}]
  %s1 = inlined_call_operand.hbm [shape: f32[8,128], index: 1, kind: input, shape index: {}]
  %s2 = inlined_call_operand.hbm [shape: bf16[128,384], index: 2, kind: input, shape index: {}]
  %s3 = inlined_call_operand.hbm [shape: f32[1,128], index: 3, kind: input, shape index: {}]
  %s4 = inlined_call_operand.hbm [shape: f32[8,8,128], index: 4, kind: output, shape index: {}]
  %s5 = sld [smem:[#allocation0]]
  $region46: #{tpu_custom_call.1} parent=0
    _
  %s7 = ssub.s32 1, %s5
  %s8 = scalar_select 0, %s7, %s5
  $region1: #{tpu_custom_call.1} parent=0
    #allocation3 [shape = 'u8[98304]{0}', space=vmem, size = 0x18000, scoped, tag = 'input window, operand 0, single buffered']
    #allocation4 [shape = 's32[1]{0}', space=sflag, size = 0x4, scoped, tag = 'scoped memory for tpu_custom_call.1']
    #allocation5 [shape = 's32[1]{0}', space=sflag, size = 0x4, scoped, tag = 'scoped memory for tpu_custom_call.1']
    #allocation6 [shape = 'u8[4096]{0}', space=vmem, size = 0x1000, scoped, tag = 'input window, operand 1, single buffered']
    #allocation7 [shape = 's32[1]{0}', space=sflag, size = 0x4, scoped, tag = 'scoped memory for tpu_custom_call.1']
    #allocation8 [shape = 'u8[98304]{0}', space=vmem, size = 0x18000, scoped, tag = 'input window, operand 2, single buffered']
    #allocation9 [shape = 'u8[512]{0}', space=vmem, size = 0x400, scoped, tag = 'input window, operand 3, single buffered']
    #allocation10 [shape = 's32[1]{0}', space=sflag, size = 0x4, scoped, tag = 'scoped memory for tpu_custom_call.1']
    #allocation11 [shape = 'u8[32768]{0}', space=vmem, size = 0x8000, scoped, tag = 'output window, operand 0, single buffered']
    %9 = vsyncpa [#allocation4], 0
    %10 = vsyncpa [#allocation7], 0
    %11 = vsyncpa [#allocation10], 0
    %12 = vsyncpa [#allocation5], 0
    // Predicated region
    $region2: #{tpu_custom_call.1} parent=1 // pred_check
      _
    $region3: #{tpu_custom_call.1} parent=1 // pred_check_branch
      %14 = sbr.rel (0) target = $region5
    $region4: #{tpu_custom_call.1} parent=1 // pred_region
      %s16 = ssub.s32 3072, 3072
      %17 = vsyncadd [#allocation4], %s16
      %s18 = sshll.u32 [#allocation3], 4
      %s19 = int_to_ptr.vmem [resolvable:$true] %s18
      %24 = dma.hbm_to_vmem [thread:$0]  %s0, 3072, %s19, [#allocation4], 384, 384, 24
    $region5: #{tpu_custom_call.1} parent=1 // pred_fallthru
      _
    // Predicated region
    $region6: #{tpu_custom_call.1} parent=1 // pred_check
      _
    $region7: #{tpu_custom_call.1} parent=1 // pred_check_branch
      %26 = sbr.rel (0) target = $region9
    $region8: #{tpu_custom_call.1} parent=1 // pred_region
      %s28 = ssub.s32 128, 128
      %29 = vsyncadd [#allocation7], %s28
      %s31 = sshll.u32 [#allocation6], 4
      %s32 = int_to_ptr.vmem [resolvable:$true] %s31
      %34 = dma.hbm_to_vmem [thread:$0]  %s1, 128, %s32, [#allocation7]
    $region9: #{tpu_custom_call.1} parent=1 // pred_fallthru
      _
    // Predicated region
    $region10: #{tpu_custom_call.1} parent=1 // pred_check
      _
    $region11: #{tpu_custom_call.1} parent=1 // pred_check_branch
      %36 = sbr.rel (0) target = $region13
    $region12: #{tpu_custom_call.1} parent=1 // pred_region
      %s38 = ssub.s32 3072, 3072
      %39 = vsyncadd [#allocation7], %s38
      %s40 = sshll.u32 [#allocation8], 4
      %s41 = int_to_ptr.vmem [resolvable:$true] %s40
      %46 = dma.hbm_to_vmem [thread:$0]  %s2, 3072, %s41, [#allocation7], 192, 192, 12
    $region13: #{tpu_custom_call.1} parent=1 // pred_fallthru
      _
    // Predicated region
    $region14: #{tpu_custom_call.1} parent=1 // pred_check
      _
    $region15: #{tpu_custom_call.1} parent=1 // pred_check_branch
      %48 = sbr.rel (0) target = $region17
    $region16: #{tpu_custom_call.1} parent=1 // pred_region
      %s50 = ssub.s32 16, 16
      %51 = vsyncadd [#allocation10], %s50
      %s53 = sshll.u32 [#allocation9], 4
      %s54 = int_to_ptr.vmem [resolvable:$true] %s53
      %56 = dma.hbm_to_vmem [thread:$0]  %s3, 16, %s54, [#allocation10]
    $region17: #{tpu_custom_call.1} parent=1 // pred_fallthru
      _
    // Predicated region
    $region18: #{tpu_custom_call.1} parent=1 // pred_check
      _
    $region19: #{tpu_custom_call.1} parent=1 // pred_check_branch
      %58 = sbr.rel (0) target = $region21
    $region20: #{tpu_custom_call.1} parent=1 // pred_region
      %59 = dma.done [#allocation4], 3072
    $region21: #{tpu_custom_call.1} parent=1 // pred_fallthru
      _
    // Predicated region
    $region22: #{tpu_custom_call.1} parent=1 // pred_check
      _
    $region23: #{tpu_custom_call.1} parent=1 // pred_check_branch
      %61 = sbr.rel (0) target = $region25
    $region24: #{tpu_custom_call.1} parent=1 // pred_region
      %62 = dma.done [#allocation7], 128
    $region25: #{tpu_custom_call.1} parent=1 // pred_fallthru
      _
    // Predicated region
    $region26: #{tpu_custom_call.1} parent=1 // pred_check
      _
    $region27: #{tpu_custom_call.1} parent=1 // pred_check_branch
      %64 = sbr.rel (0) target = $region29
    $region28: #{tpu_custom_call.1} parent=1 // pred_region
      %65 = dma.done [#allocation7], 3072
    $region29: #{tpu_custom_call.1} parent=1 // pred_fallthru
      _
    // Predicated region
    $region30: #{tpu_custom_call.1} parent=1 // pred_check
      _
    $region31: #{tpu_custom_call.1} parent=1 // pred_check_branch
      %67 = sbr.rel (0) target = $region33
    $region32: #{tpu_custom_call.1} parent=1 // pred_region
      %68 = dma.done [#allocation10], 16
    $region33: #{tpu_custom_call.1} parent=1 // pred_fallthru
      _
    %p70 = scmp.eq.s32.totalorder 0, 0
    // Predicated region
    $region34: #{tpu_custom_call.1} parent=1 // pred_check
      %p71 = pneg %p70
    $region35: #{tpu_custom_call.1} parent=1 // pred_check_branch
      %73 = sbr.rel (%p71) target = $region37
    $region36: #{tpu_custom_call.1} parent=1 // pred_region
      %v74 = vld [vmem:[#allocation6] sm:$0xff]
      %75 = vst [vmem:[#allocation2] sm:$0xff] %v74
    $region37: #{tpu_custom_call.1} parent=1 // pred_fallthru
      _
    %v76 = vld [vmem:[#allocation2] sm:$0xff]
    %v77 = vld [vmem:[#allocation8] sm:$0xff]
    %v78 = vld [vmem:[#allocation8 + $0x8] sm:$0xf]
    %v79 = vld [vmem:[#allocation8 + $0xc] sm:$0xff]
    %v80 = vld [vmem:[#allocation8 + $0x14] sm:$0xf]
    %v81 = vld [vmem:[#allocation8 + $0x18] sm:$0xff]
    %v82 = vld [vmem:[#allocation8 + $0x20] sm:$0xf]
    %v83 = vld [vmem:[#allocation8 + $0x24] sm:$0xff]
    %v84 = vld [vmem:[#allocation8 + $0x2c] sm:$0xf]
    %v85 = vld [vmem:[#allocation8 + $0x30] sm:$0xff]
    %v86 = vld [vmem:[#allocation8 + $0x38] sm:$0xf]
    %v87 = vld [vmem:[#allocation8 + $0x3c] sm:$0xff]
    %v88 = vld [vmem:[#allocation8 + $0x44] sm:$0xf]
    %v89 = vld [vmem:[#allocation8 + $0x48] sm:$0xff]
    %v90 = vld [vmem:[#allocation8 + $0x50] sm:$0xf]
    %v91 = vld [vmem:[#allocation8 + $0x54] sm:$0xff]
    %v92 = vld [vmem:[#allocation8 + $0x5c] sm:$0xf]
    %v93 = vld [vmem:[#allocation8 + $0x60] sm:$0xff]
    %v94 = vld [vmem:[#allocation8 + $0x68] sm:$0xf]
    %v95 = vld [vmem:[#allocation8 + $0x6c] sm:$0xff]
    %v96 = vld [vmem:[#allocation8 + $0x74] sm:$0xf]
    %v97 = vld [vmem:[#allocation8 + $0x78] sm:$0xff]
    %v98 = vld [vmem:[#allocation8 + $0x80] sm:$0xf]
    %v99 = vld [vmem:[#allocation8 + $0x84] sm:$0xff]
    %v100 = vld [vmem:[#allocation8 + $0x8c] sm:$0xf]
    %v101 = vld [vmem:[#allocation8 + $0x90] sm:$0xff]
    %v102 = vld [vmem:[#allocation8 + $0x98] sm:$0xf]
    %v103 = vld [vmem:[#allocation8 + $0x9c] sm:$0xff]
    %v104 = vld [vmem:[#allocation8 + $0xa4] sm:$0xf]
    %v105 = vld [vmem:[#allocation8 + $0xa8] sm:$0xff]
    %v106 = vld [vmem:[#allocation8 + $0xb0] sm:$0xf]
    %v107 = vld [vmem:[#allocation8 + $0xb4] sm:$0xff]
    %v108 = vld [vmem:[#allocation8 + $0xbc] sm:$0xf]
    %v109 = vld [vmem:[#allocation9] sm:$0x1]
    %v111 = vlaneseq
    %v112 = vshrl.u32 %v111, 7
    %v113 = vsub.s32 0, %v112
    %v114 = vrot.slane %v109, %v113
    %v116 = vpack.c.bf16 %v76, %v76
    %v149 = vunpack.c.l.b16 %v77
    %v150 = vunpack.c.h.b16 %v77
    %v151 = vunpack.c.l.b16 %v78
    %v152 = vunpack.c.l.b16 %v79
    %v153 = vunpack.c.h.b16 %v79
    %v154 = vunpack.c.l.b16 %v80
    %v155 = vunpack.c.l.b16 %v81
    %v156 = vunpack.c.h.b16 %v81
    %v157 = vunpack.c.l.b16 %v82
    %v158 = vunpack.c.l.b16 %v83
    %v159 = vunpack.c.h.b16 %v83
    %v160 = vunpack.c.l.b16 %v84
    %v161 = vunpack.c.l.b16 %v85
    %v162 = vunpack.c.h.b16 %v85
    %v163 = vunpack.c.l.b16 %v86
    %v164 = vunpack.c.l.b16 %v87
    %v165 = vunpack.c.h.b16 %v87
    %v166 = vunpack.c.l.b16 %v88
    %v167 = vunpack.c.l.b16 %v89
    %v168 = vunpack.c.h.b16 %v89
    %v169 = vunpack.c.l.b16 %v90
    %v170 = vunpack.c.l.b16 %v91
    %v171 = vunpack.c.h.b16 %v91
    %v172 = vunpack.c.l.b16 %v92
    %v173 = vunpack.c.l.b16 %v93
    %v174 = vunpack.c.h.b16 %v93
    %v175 = vunpack.c.l.b16 %v94
    %v176 = vunpack.c.l.b16 %v95
    %v177 = vunpack.c.h.b16 %v95
    %v178 = vunpack.c.l.b16 %v96
    %v179 = vunpack.c.l.b16 %v97
    %v180 = vunpack.c.h.b16 %v97
    %v181 = vunpack.c.l.b16 %v98
    %v182 = vunpack.c.l.b16 %v99
    %v183 = vunpack.c.h.b16 %v99
    %v184 = vunpack.c.l.b16 %v100
    %v185 = vunpack.c.l.b16 %v101
    %v186 = vunpack.c.h.b16 %v101
    %v187 = vunpack.c.l.b16 %v102
    %v188 = vunpack.c.l.b16 %v103
    %v189 = vunpack.c.h.b16 %v103
    %v190 = vunpack.c.l.b16 %v104
    %v191 = vunpack.c.l.b16 %v105
    %v192 = vunpack.c.h.b16 %v105
    %v193 = vunpack.c.l.b16 %v106
    %v194 = vunpack.c.l.b16 %v107
    %v195 = vunpack.c.h.b16 %v107
    %v196 = vunpack.c.l.b16 %v108
    %v197 = vpack.c.b16 %v152, %v149
    %v198 = vpack.c.b16 %v153, %v150
    %v199 = vpack.c.b16 %v154, %v151
    %v200 = vpack.c.b16 %v158, %v155
    %v201 = vpack.c.b16 %v159, %v156
    %v202 = vpack.c.b16 %v160, %v157
    %v203 = vpack.c.b16 %v164, %v161
    %v204 = vpack.c.b16 %v165, %v162
    %v205 = vpack.c.b16 %v166, %v163
    %v206 = vpack.c.b16 %v170, %v167
    %v207 = vpack.c.b16 %v171, %v168
    %v208 = vpack.c.b16 %v172, %v169
    %v209 = vpack.c.b16 %v176, %v173
    %v210 = vpack.c.b16 %v177, %v174
    %v211 = vpack.c.b16 %v178, %v175
    %v212 = vpack.c.b16 %v182, %v179
    %v213 = vpack.c.b16 %v183, %v180
    %v214 = vpack.c.b16 %v184, %v181
    %v215 = vpack.c.b16 %v188, %v185
    %v216 = vpack.c.b16 %v189, %v186
    %v217 = vpack.c.b16 %v190, %v187
    %v218 = vpack.c.b16 %v194, %v191
    %v219 = vpack.c.b16 %v195, %v192
    %v220 = vpack.c.b16 %v196, %v193
    %245 = vmatprep.subr.bf16.mxu0 %v198
    %246 = vmatpush1.bf16.msra.mxu0 %v197
    %247 = vmatprep.subr.bf16.mxu0 %v201
    %248 = vmatpush1.bf16.msra.mxu0 %v200
    %249 = vmatprep.subr.bf16.mxu0 %v204
    %250 = vmatpush1.bf16.msra.mxu0 %v203
    %251 = vmatprep.subr.bf16.mxu0 %v207
    %252 = vmatpush1.bf16.msra.mxu0 %v206
    %253 = vmatprep.subr.bf16.mxu0 %v210
    %254 = vmatpush1.bf16.msra.mxu0 %v209
    %255 = vmatprep.subr.bf16.mxu0 %v213
    %256 = vmatpush1.bf16.msra.mxu0 %v212
    %257 = vmatprep.subr.bf16.mxu0 %v216
    %258 = vmatpush1.bf16.msra.mxu0 %v215
    %259 = vmatprep.subr.bf16.mxu0 %v219
    %260 = vmatpush1.bf16.msra.mxu0 %v218
    %261 = vmatprep.subr.bf16.mxu0 0
    %262 = vmatpush1.bf16.msra.mxu0 0
    %263 = vmatprep.subr.bf16.mxu0 0
    %264 = vmatpush1.bf16.msra.mxu0 0
    %265 = vmatprep.subr.bf16.mxu0 0
    %266 = vmatpush1.bf16.msra.mxu0 0
    %267 = vmatprep.subr.bf16.mxu0 0
    %268 = vmatpush1.bf16.msra.mxu0 0
    %269 = vmatprep.subr.bf16.mxu0 0
    %270 = vmatpush1.bf16.msra.mxu0 0
    %271 = vmatprep.subr.bf16.mxu0 0
    %272 = vmatpush1.bf16.msra.mxu0 0
    %273 = vmatprep.subr.bf16.mxu0 0
    %274 = vmatpush1.bf16.msra.mxu0 0
    %275 = vmatprep.subr.bf16.mxu0 0
    %276 = vmatpush1.bf16.msra.mxu0 0
    %277 = vmatprep.mubr.bf16.mxu0 0
    %278 = vmatmul.mubr.bf16.gmra.mrb[0].mxu0 %v116
    %v279 = vpop.f32.mrb[0].mxu0
    %v280 = vadd.f32 0.0, %v279
    %v281 = vpop.f32.mrb[0].mxu0
    %v282 = vadd.f32 0.0, %v281
    %v283 = vpop.f32.mrb[0].mxu0
    %v284 = vpop.f32.mrb[0].mxu0
    %285 = vdwg.mxu0
    %286 = vmatprep.subr.bf16.mxu0 0
    %287 = vmatpush1.bf16.msra.mxu0 %v199
    %288 = vmatprep.subr.bf16.mxu0 0
    %289 = vmatpush1.bf16.msra.mxu0 %v202
    %290 = vmatprep.subr.bf16.mxu0 0
    %291 = vmatpush1.bf16.msra.mxu0 %v205
    %292 = vmatprep.subr.bf16.mxu0 0
    %293 = vmatpush1.bf16.msra.mxu0 %v208
    %294 = vmatprep.subr.bf16.mxu0 0
    %295 = vmatpush1.bf16.msra.mxu0 %v211
    %296 = vmatprep.subr.bf16.mxu0 0
    %297 = vmatpush1.bf16.msra.mxu0 %v214
    %298 = vmatprep.subr.bf16.mxu0 0
    %299 = vmatpush1.bf16.msra.mxu0 %v217
    %300 = vmatprep.subr.bf16.mxu0 0
    %301 = vmatpush1.bf16.msra.mxu0 %v220
    %302 = vmatprep.subr.bf16.mxu0 0
    %303 = vmatpush1.bf16.msra.mxu0 0
    %304 = vmatprep.subr.bf16.mxu0 0
    %305 = vmatpush1.bf16.msra.mxu0 0
    %306 = vmatprep.subr.bf16.mxu0 0
    %307 = vmatpush1.bf16.msra.mxu0 0
    %308 = vmatprep.subr.bf16.mxu0 0
    %309 = vmatpush1.bf16.msra.mxu0 0
    %310 = vmatprep.subr.bf16.mxu0 0
    %311 = vmatpush1.bf16.msra.mxu0 0
    %312 = vmatprep.subr.bf16.mxu0 0
    %313 = vmatpush1.bf16.msra.mxu0 0
    %314 = vmatprep.subr.bf16.mxu0 0
    %315 = vmatpush1.bf16.msra.mxu0 0
    %316 = vmatprep.subr.bf16.mxu0 0
    %317 = vmatpush1.bf16.msra.mxu0 0
    %318 = vmatprep.mubr.bf16.mxu0 0
    %319 = vmatmul.mubr.bf16.gmra.mrb[0].mxu0 %v116
    %v320 = vpop.f32.mrb[0].mxu0
    %v321 = vadd.f32 0.0, %v320
    %v322 = vpop.f32.mrb[0].mxu0
    %v323 = vpop.f32.mrb[0].mxu0
    %v324 = vpop.f32.mrb[0].mxu0
    %325 = vdwg.mxu0
    %v326 = vld [vmem:[#allocation3] sm:$0xff]
    %v327 = vld [vmem:[#allocation3 + $0x8] sm:$0xff]
    %v328 = vld [vmem:[#allocation3 + $0x10] sm:$0xff]
    %v329 = vadd.f32 %v326, %v280
    %v330 = vxor.u32 %v329, 2147483648
    %v331 = vmul.f32 %v330, 1.442695
    %v332 = vpow.pop %v331
    %v333 = vadd.f32 %v332, 1.0
    %v334 = vrcp.pop %v333
    %v335 = vmul.f32 1.0, %v334
    %v336 = vadd.f32 %v327, %v282
    %v337 = vxor.u32 %v336, 2147483648
    %v338 = vmul.f32 %v337, 1.442695
    %v339 = vpow.pop %v338
    %v340 = vadd.f32 %v339, 1.0
    %v341 = vrcp.pop %v340
    %v342 = vmul.f32 1.0, %v341
    %v343 = vadd.f32 %v321, %v114
    %v344 = vmul.f32 %v335, %v343
    %v345 = vadd.f32 %v328, %v344
    %v346 = vtanh.pop %v345
    %v347 = vsub.f32 %v76, %v346
    %v348 = vmul.f32 %v342, %v347
    %v349 = vadd.f32 %v346, %v348
    %350 = vst [vmem:[#allocation11] sm:$0xff] %v349
    %v351 = vpack.c.bf16 %v349, %v349
    %352 = vmatprep.subr.bf16.mxu0 %v198
    %353 = vmatpush1.bf16.msra.mxu0 %v197
    %354 = vmatprep.subr.bf16.mxu0 %v201
    %355 = vmatpush1.bf16.msra.mxu0 %v200
    %356 = vmatprep.subr.bf16.mxu0 %v204
    %357 = vmatpush1.bf16.msra.mxu0 %v203
    %358 = vmatprep.subr.bf16.mxu0 %v207
    %359 = vmatpush1.bf16.msra.mxu0 %v206
    %360 = vmatprep.subr.bf16.mxu0 %v210
    %361 = vmatpush1.bf16.msra.mxu0 %v209
    %362 = vmatprep.subr.bf16.mxu0 %v213
    %363 = vmatpush1.bf16.msra.mxu0 %v212
    %364 = vmatprep.subr.bf16.mxu0 %v216
    %365 = vmatpush1.bf16.msra.mxu0 %v215
    %366 = vmatprep.subr.bf16.mxu0 %v219
    %367 = vmatpush1.bf16.msra.mxu0 %v218
    %368 = vmatprep.subr.bf16.mxu0 0
    %369 = vmatpush1.bf16.msra.mxu0 0
    %370 = vmatprep.subr.bf16.mxu0 0
    %371 = vmatpush1.bf16.msra.mxu0 0
    %372 = vmatprep.subr.bf16.mxu0 0
    %373 = vmatpush1.bf16.msra.mxu0 0
    %374 = vmatprep.subr.bf16.mxu0 0
    %375 = vmatpush1.bf16.msra.mxu0 0
    %376 = vmatprep.subr.bf16.mxu0 0
    %377 = vmatpush1.bf16.msra.mxu0 0
    %378 = vmatprep.subr.bf16.mxu0 0
    %379 = vmatpush1.bf16.msra.mxu0 0
    %380 = vmatprep.subr.bf16.mxu0 0
    %381 = vmatpush1.bf16.msra.mxu0 0
    %382 = vmatprep.subr.bf16.mxu0 0
    %383 = vmatpush1.bf16.msra.mxu0 0
    %384 = vmatprep.mubr.bf16.mxu0 0
    %385 = vmatmul.mubr.bf16.gmra.mrb[0].mxu0 %v351
    %v386 = vpop.f32.mrb[0].mxu0
    %v387 = vadd.f32 0.0, %v386
    %v388 = vpop.f32.mrb[0].mxu0
    %v389 = vadd.f32 0.0, %v388
    %v390 = vpop.f32.mrb[0].mxu0
    %v391 = vpop.f32.mrb[0].mxu0
    %392 = vdwg.mxu0
    %393 = vmatprep.subr.bf16.mxu0 0
    %394 = vmatpush1.bf16.msra.mxu0 %v199
    %395 = vmatprep.subr.bf16.mxu0 0
    %396 = vmatpush1.bf16.msra.mxu0 %v202
    %397 = vmatprep.subr.bf16.mxu0 0
    %398 = vmatpush1.bf16.msra.mxu0 %v205
    %399 = vmatprep.subr.bf16.mxu0 0
    %400 = vmatpush1.bf16.msra.mxu0 %v208
    %401 = vmatprep.subr.bf16.mxu0 0
    %402 = vmatpush1.bf16.msra.mxu0 %v211
    %403 = vmatprep.subr.bf16.mxu0 0
    %404 = vmatpush1.bf16.msra.mxu0 %v214
    %405 = vmatprep.subr.bf16.mxu0 0
    %406 = vmatpush1.bf16.msra.mxu0 %v217
    %407 = vmatprep.subr.bf16.mxu0 0
    %408 = vmatpush1.bf16.msra.mxu0 %v220
    %409 = vmatprep.subr.bf16.mxu0 0
    %410 = vmatpush1.bf16.msra.mxu0 0
    %411 = vmatprep.subr.bf16.mxu0 0
    %412 = vmatpush1.bf16.msra.mxu0 0
    %413 = vmatprep.subr.bf16.mxu0 0
    %414 = vmatpush1.bf16.msra.mxu0 0
    %415 = vmatprep.subr.bf16.mxu0 0
    %416 = vmatpush1.bf16.msra.mxu0 0
    %417 = vmatprep.subr.bf16.mxu0 0
    %418 = vmatpush1.bf16.msra.mxu0 0
    %419 = vmatprep.subr.bf16.mxu0 0
    %420 = vmatpush1.bf16.msra.mxu0 0
    %421 = vmatprep.subr.bf16.mxu0 0
    %422 = vmatpush1.bf16.msra.mxu0 0
    %423 = vmatprep.subr.bf16.mxu0 0
    %424 = vmatpush1.bf16.msra.mxu0 0
    %425 = vmatprep.mubr.bf16.mxu0 0
    %426 = vmatmul.mubr.bf16.gmra.mrb[0].mxu0 %v351
    %v427 = vpop.f32.mrb[0].mxu0
    %v428 = vadd.f32 0.0, %v427
    %v429 = vpop.f32.mrb[0].mxu0
    %v430 = vpop.f32.mrb[0].mxu0
    %v431 = vpop.f32.mrb[0].mxu0
    %432 = vdwg.mxu0
    %s433 = scalar_lea.vmem [#allocation3], 24
    %v434 = vld [vmem:[%s433] sm:$0xff]
    %v435 = vld [vmem:[%s433 + $0x8] sm:$0xff]
    %v436 = vld [vmem:[%s433 + $0x10] sm:$0xff]
    %v437 = vadd.f32 %v434, %v387
    %v438 = vxor.u32 %v437, 2147483648
    %v439 = vmul.f32 %v438, 1.442695
    %v440 = vpow.pop %v439
    %v441 = vadd.f32 %v440, 1.0
    %v442 = vrcp.pop %v441
    %v443 = vmul.f32 1.0, %v442
    %v444 = vadd.f32 %v435, %v389
    %v445 = vxor.u32 %v444, 2147483648
    %v446 = vmul.f32 %v445, 1.442695
    %v447 = vpow.pop %v446
    %v448 = vadd.f32 %v447, 1.0
    %v449 = vrcp.pop %v448
    %v450 = vmul.f32 1.0, %v449
    %v451 = vadd.f32 %v428, %v114
    %v452 = vmul.f32 %v443, %v451
    %v453 = vadd.f32 %v436, %v452
    %v454 = vtanh.pop %v453
    %v455 = vsub.f32 %v349, %v454
    %v456 = vmul.f32 %v450, %v455
    %v457 = vadd.f32 %v454, %v456
    %s458 = scalar_lea.vmem [#allocation11], 8
    %459 = vst [vmem:[%s458] sm:$0xff] %v457
    %v460 = vpack.c.bf16 %v457, %v457
    %461 = vmatprep.subr.bf16.mxu0 %v198
    %462 = vmatpush1.bf16.msra.mxu0 %v197
    %463 = vmatprep.subr.bf16.mxu0 %v201
    %464 = vmatpush1.bf16.msra.mxu0 %v200
    %465 = vmatprep.subr.bf16.mxu0 %v204
    %466 = vmatpush1.bf16.msra.mxu0 %v203
    %467 = vmatprep.subr.bf16.mxu0 %v207
    %468 = vmatpush1.bf16.msra.mxu0 %v206
    %469 = vmatprep.subr.bf16.mxu0 %v210
    %470 = vmatpush1.bf16.msra.mxu0 %v209
    %471 = vmatprep.subr.bf16.mxu0 %v213
    %472 = vmatpush1.bf16.msra.mxu0 %v212
    %473 = vmatprep.subr.bf16.mxu0 %v216
    %474 = vmatpush1.bf16.msra.mxu0 %v215
    %475 = vmatprep.subr.bf16.mxu0 %v219
    %476 = vmatpush1.bf16.msra.mxu0 %v218
    %477 = vmatprep.subr.bf16.mxu0 0
    %478 = vmatpush1.bf16.msra.mxu0 0
    %479 = vmatprep.subr.bf16.mxu0 0
    %480 = vmatpush1.bf16.msra.mxu0 0
    %481 = vmatprep.subr.bf16.mxu0 0
    %482 = vmatpush1.bf16.msra.mxu0 0
    %483 = vmatprep.subr.bf16.mxu0 0
    %484 = vmatpush1.bf16.msra.mxu0 0
    %485 = vmatprep.subr.bf16.mxu0 0
    %486 = vmatpush1.bf16.msra.mxu0 0
    %487 = vmatprep.subr.bf16.mxu0 0
    %488 = vmatpush1.bf16.msra.mxu0 0
    %489 = vmatprep.subr.bf16.mxu0 0
    %490 = vmatpush1.bf16.msra.mxu0 0
    %491 = vmatprep.subr.bf16.mxu0 0
    %492 = vmatpush1.bf16.msra.mxu0 0
    %493 = vmatprep.mubr.bf16.mxu0 0
    %494 = vmatmul.mubr.bf16.gmra.mrb[0].mxu0 %v460
    %v495 = vpop.f32.mrb[0].mxu0
    %v496 = vadd.f32 0.0, %v495
    %v497 = vpop.f32.mrb[0].mxu0
    %v498 = vadd.f32 0.0, %v497
    %v499 = vpop.f32.mrb[0].mxu0
    %v500 = vpop.f32.mrb[0].mxu0
    %501 = vdwg.mxu0
    %502 = vmatprep.subr.bf16.mxu0 0
    %503 = vmatpush1.bf16.msra.mxu0 %v199
    %504 = vmatprep.subr.bf16.mxu0 0
    %505 = vmatpush1.bf16.msra.mxu0 %v202
    %506 = vmatprep.subr.bf16.mxu0 0
    %507 = vmatpush1.bf16.msra.mxu0 %v205
    %508 = vmatprep.subr.bf16.mxu0 0
    %509 = vmatpush1.bf16.msra.mxu0 %v208
    %510 = vmatprep.subr.bf16.mxu0 0
    %511 = vmatpush1.bf16.msra.mxu0 %v211
    %512 = vmatprep.subr.bf16.mxu0 0
    %513 = vmatpush1.bf16.msra.mxu0 %v214
    %514 = vmatprep.subr.bf16.mxu0 0
    %515 = vmatpush1.bf16.msra.mxu0 %v217
    %516 = vmatprep.subr.bf16.mxu0 0
    %517 = vmatpush1.bf16.msra.mxu0 %v220
    %518 = vmatprep.subr.bf16.mxu0 0
    %519 = vmatpush1.bf16.msra.mxu0 0
    %520 = vmatprep.subr.bf16.mxu0 0
    %521 = vmatpush1.bf16.msra.mxu0 0
    %522 = vmatprep.subr.bf16.mxu0 0
    %523 = vmatpush1.bf16.msra.mxu0 0
    %524 = vmatprep.subr.bf16.mxu0 0
    %525 = vmatpush1.bf16.msra.mxu0 0
    %526 = vmatprep.subr.bf16.mxu0 0
    %527 = vmatpush1.bf16.msra.mxu0 0
    %528 = vmatprep.subr.bf16.mxu0 0
    %529 = vmatpush1.bf16.msra.mxu0 0
    %530 = vmatprep.subr.bf16.mxu0 0
    %531 = vmatpush1.bf16.msra.mxu0 0
    %532 = vmatprep.subr.bf16.mxu0 0
    %533 = vmatpush1.bf16.msra.mxu0 0
    %534 = vmatprep.mubr.bf16.mxu0 0
    %535 = vmatmul.mubr.bf16.gmra.mrb[0].mxu0 %v460
    %v536 = vpop.f32.mrb[0].mxu0
    %v537 = vadd.f32 0.0, %v536
    %v538 = vpop.f32.mrb[0].mxu0
    %v539 = vpop.f32.mrb[0].mxu0
    %v540 = vpop.f32.mrb[0].mxu0
    %541 = vdwg.mxu0
    %s542 = scalar_lea.vmem [#allocation3], 48
    %v543 = vld [vmem:[%s542] sm:$0xff]
    %v544 = vld [vmem:[%s542 + $0x8] sm:$0xff]
    %v545 = vld [vmem:[%s542 + $0x10] sm:$0xff]
    %v546 = vadd.f32 %v543, %v496
    %v547 = vxor.u32 %v546, 2147483648
    %v548 = vmul.f32 %v547, 1.442695
    %v549 = vpow.pop %v548
    %v550 = vadd.f32 %v549, 1.0
    %v551 = vrcp.pop %v550
    %v552 = vmul.f32 1.0, %v551
    %v553 = vadd.f32 %v544, %v498
    %v554 = vxor.u32 %v553, 2147483648
    %v555 = vmul.f32 %v554, 1.442695
    %v556 = vpow.pop %v555
    %v557 = vadd.f32 %v556, 1.0
    %v558 = vrcp.pop %v557
    %v559 = vmul.f32 1.0, %v558
    %v560 = vadd.f32 %v537, %v114
    %v561 = vmul.f32 %v552, %v560
    %v562 = vadd.f32 %v545, %v561
    %v563 = vtanh.pop %v562
    %v564 = vsub.f32 %v457, %v563
    %v565 = vmul.f32 %v559, %v564
    %v566 = vadd.f32 %v563, %v565
    %s567 = scalar_lea.vmem [#allocation11], 16
    %568 = vst [vmem:[%s567] sm:$0xff] %v566
    %v569 = vpack.c.bf16 %v566, %v566
    %570 = vmatprep.subr.bf16.mxu0 %v198
    %571 = vmatpush1.bf16.msra.mxu0 %v197
    %572 = vmatprep.subr.bf16.mxu0 %v201
    %573 = vmatpush1.bf16.msra.mxu0 %v200
    %574 = vmatprep.subr.bf16.mxu0 %v204
    %575 = vmatpush1.bf16.msra.mxu0 %v203
    %576 = vmatprep.subr.bf16.mxu0 %v207
    %577 = vmatpush1.bf16.msra.mxu0 %v206
    %578 = vmatprep.subr.bf16.mxu0 %v210
    %579 = vmatpush1.bf16.msra.mxu0 %v209
    %580 = vmatprep.subr.bf16.mxu0 %v213
    %581 = vmatpush1.bf16.msra.mxu0 %v212
    %582 = vmatprep.subr.bf16.mxu0 %v216
    %583 = vmatpush1.bf16.msra.mxu0 %v215
    %584 = vmatprep.subr.bf16.mxu0 %v219
    %585 = vmatpush1.bf16.msra.mxu0 %v218
    %586 = vmatprep.subr.bf16.mxu0 0
    %587 = vmatpush1.bf16.msra.mxu0 0
    %588 = vmatprep.subr.bf16.mxu0 0
    %589 = vmatpush1.bf16.msra.mxu0 0
    %590 = vmatprep.subr.bf16.mxu0 0
    %591 = vmatpush1.bf16.msra.mxu0 0
    %592 = vmatprep.subr.bf16.mxu0 0
    %593 = vmatpush1.bf16.msra.mxu0 0
    %594 = vmatprep.subr.bf16.mxu0 0
    %595 = vmatpush1.bf16.msra.mxu0 0
    %596 = vmatprep.subr.bf16.mxu0 0
    %597 = vmatpush1.bf16.msra.mxu0 0
    %598 = vmatprep.subr.bf16.mxu0 0
    %599 = vmatpush1.bf16.msra.mxu0 0
    %600 = vmatprep.subr.bf16.mxu0 0
    %601 = vmatpush1.bf16.msra.mxu0 0
    %602 = vmatprep.mubr.bf16.mxu0 0
    %603 = vmatmul.mubr.bf16.gmra.mrb[0].mxu0 %v569
    %v604 = vpop.f32.mrb[0].mxu0
    %v605 = vadd.f32 0.0, %v604
    %v606 = vpop.f32.mrb[0].mxu0
    %v607 = vadd.f32 0.0, %v606
    %v608 = vpop.f32.mrb[0].mxu0
    %v609 = vpop.f32.mrb[0].mxu0
    %610 = vdwg.mxu0
    %611 = vmatprep.subr.bf16.mxu0 0
    %612 = vmatpush1.bf16.msra.mxu0 %v199
    %613 = vmatprep.subr.bf16.mxu0 0
    %614 = vmatpush1.bf16.msra.mxu0 %v202
    %615 = vmatprep.subr.bf16.mxu0 0
    %616 = vmatpush1.bf16.msra.mxu0 %v205
    %617 = vmatprep.subr.bf16.mxu0 0
    %618 = vmatpush1.bf16.msra.mxu0 %v208
    %619 = vmatprep.subr.bf16.mxu0 0
    %620 = vmatpush1.bf16.msra.mxu0 %v211
    %621 = vmatprep.subr.bf16.mxu0 0
    %622 = vmatpush1.bf16.msra.mxu0 %v214
    %623 = vmatprep.subr.bf16.mxu0 0
    %624 = vmatpush1.bf16.msra.mxu0 %v217
    %625 = vmatprep.subr.bf16.mxu0 0
    %626 = vmatpush1.bf16.msra.mxu0 %v220
    %627 = vmatprep.subr.bf16.mxu0 0
    %628 = vmatpush1.bf16.msra.mxu0 0
    %629 = vmatprep.subr.bf16.mxu0 0
    %630 = vmatpush1.bf16.msra.mxu0 0
    %631 = vmatprep.subr.bf16.mxu0 0
    %632 = vmatpush1.bf16.msra.mxu0 0
    %633 = vmatprep.subr.bf16.mxu0 0
    %634 = vmatpush1.bf16.msra.mxu0 0
    %635 = vmatprep.subr.bf16.mxu0 0
    %636 = vmatpush1.bf16.msra.mxu0 0
    %637 = vmatprep.subr.bf16.mxu0 0
    %638 = vmatpush1.bf16.msra.mxu0 0
    %639 = vmatprep.subr.bf16.mxu0 0
    %640 = vmatpush1.bf16.msra.mxu0 0
    %641 = vmatprep.subr.bf16.mxu0 0
    %642 = vmatpush1.bf16.msra.mxu0 0
    %643 = vmatprep.mubr.bf16.mxu0 0
    %644 = vmatmul.mubr.bf16.gmra.mrb[0].mxu0 %v569
    %v645 = vpop.f32.mrb[0].mxu0
    %v646 = vadd.f32 0.0, %v645
    %v647 = vpop.f32.mrb[0].mxu0
    %v648 = vpop.f32.mrb[0].mxu0
    %v649 = vpop.f32.mrb[0].mxu0
    %650 = vdwg.mxu0
    %s651 = scalar_lea.vmem [#allocation3], 72
    %v652 = vld [vmem:[%s651] sm:$0xff]
    %v653 = vld [vmem:[%s651 + $0x8] sm:$0xff]
    %v654 = vld [vmem:[%s651 + $0x10] sm:$0xff]
    %v655 = vadd.f32 %v652, %v605
    %v656 = vxor.u32 %v655, 2147483648
    %v657 = vmul.f32 %v656, 1.442695
    %v658 = vpow.pop %v657
    %v659 = vadd.f32 %v658, 1.0
    %v660 = vrcp.pop %v659
    %v661 = vmul.f32 1.0, %v660
    %v662 = vadd.f32 %v653, %v607
    %v663 = vxor.u32 %v662, 2147483648
    %v664 = vmul.f32 %v663, 1.442695
    %v665 = vpow.pop %v664
    %v666 = vadd.f32 %v665, 1.0
    %v667 = vrcp.pop %v666
    %v668 = vmul.f32 1.0, %v667
    %v669 = vadd.f32 %v646, %v114
    %v670 = vmul.f32 %v661, %v669
    %v671 = vadd.f32 %v654, %v670
    %v672 = vtanh.pop %v671
    %v673 = vsub.f32 %v566, %v672
    %v674 = vmul.f32 %v668, %v673
    %v675 = vadd.f32 %v672, %v674
    %s676 = scalar_lea.vmem [#allocation11], 24
    %677 = vst [vmem:[%s676] sm:$0xff] %v675
    %v678 = vpack.c.bf16 %v675, %v675
    %679 = vmatprep.subr.bf16.mxu0 %v198
    %680 = vmatpush1.bf16.msra.mxu0 %v197
    %681 = vmatprep.subr.bf16.mxu0 %v201
    %682 = vmatpush1.bf16.msra.mxu0 %v200
    %683 = vmatprep.subr.bf16.mxu0 %v204
    %684 = vmatpush1.bf16.msra.mxu0 %v203
    %685 = vmatprep.subr.bf16.mxu0 %v207
    %686 = vmatpush1.bf16.msra.mxu0 %v206
    %687 = vmatprep.subr.bf16.mxu0 %v210
    %688 = vmatpush1.bf16.msra.mxu0 %v209
    %689 = vmatprep.subr.bf16.mxu0 %v213
    %690 = vmatpush1.bf16.msra.mxu0 %v212
    %691 = vmatprep.subr.bf16.mxu0 %v216
    %692 = vmatpush1.bf16.msra.mxu0 %v215
    %693 = vmatprep.subr.bf16.mxu0 %v219
    %694 = vmatpush1.bf16.msra.mxu0 %v218
    %695 = vmatprep.subr.bf16.mxu0 0
    %696 = vmatpush1.bf16.msra.mxu0 0
    %697 = vmatprep.subr.bf16.mxu0 0
    %698 = vmatpush1.bf16.msra.mxu0 0
    %699 = vmatprep.subr.bf16.mxu0 0
    %700 = vmatpush1.bf16.msra.mxu0 0
    %701 = vmatprep.subr.bf16.mxu0 0
    %702 = vmatpush1.bf16.msra.mxu0 0
    %703 = vmatprep.subr.bf16.mxu0 0
    %704 = vmatpush1.bf16.msra.mxu0 0
    %705 = vmatprep.subr.bf16.mxu0 0
    %706 = vmatpush1.bf16.msra.mxu0 0
    %707 = vmatprep.subr.bf16.mxu0 0
    %708 = vmatpush1.bf16.msra.mxu0 0
    %709 = vmatprep.subr.bf16.mxu0 0
    %710 = vmatpush1.bf16.msra.mxu0 0
    %711 = vmatprep.mubr.bf16.mxu0 0
    %712 = vmatmul.mubr.bf16.gmra.mrb[0].mxu0 %v678
    %v713 = vpop.f32.mrb[0].mxu0
    %v714 = vadd.f32 0.0, %v713
    %v715 = vpop.f32.mrb[0].mxu0
    %v716 = vadd.f32 0.0, %v715
    %v717 = vpop.f32.mrb[0].mxu0
    %v718 = vpop.f32.mrb[0].mxu0
    %719 = vdwg.mxu0
    %720 = vmatprep.subr.bf16.mxu0 0
    %721 = vmatpush1.bf16.msra.mxu0 %v199
    %722 = vmatprep.subr.bf16.mxu0 0
    %723 = vmatpush1.bf16.msra.mxu0 %v202
    %724 = vmatprep.subr.bf16.mxu0 0
    %725 = vmatpush1.bf16.msra.mxu0 %v205
    %726 = vmatprep.subr.bf16.mxu0 0
    %727 = vmatpush1.bf16.msra.mxu0 %v208
    %728 = vmatprep.subr.bf16.mxu0 0
    %729 = vmatpush1.bf16.msra.mxu0 %v211
    %730 = vmatprep.subr.bf16.mxu0 0
    %731 = vmatpush1.bf16.msra.mxu0 %v214
    %732 = vmatprep.subr.bf16.mxu0 0
    %733 = vmatpush1.bf16.msra.mxu0 %v217
    %734 = vmatprep.subr.bf16.mxu0 0
    %735 = vmatpush1.bf16.msra.mxu0 %v220
    %736 = vmatprep.subr.bf16.mxu0 0
    %737 = vmatpush1.bf16.msra.mxu0 0
    %738 = vmatprep.subr.bf16.mxu0 0
    %739 = vmatpush1.bf16.msra.mxu0 0
    %740 = vmatprep.subr.bf16.mxu0 0
    %741 = vmatpush1.bf16.msra.mxu0 0
    %742 = vmatprep.subr.bf16.mxu0 0
    %743 = vmatpush1.bf16.msra.mxu0 0
    %744 = vmatprep.subr.bf16.mxu0 0
    %745 = vmatpush1.bf16.msra.mxu0 0
    %746 = vmatprep.subr.bf16.mxu0 0
    %747 = vmatpush1.bf16.msra.mxu0 0
    %748 = vmatprep.subr.bf16.mxu0 0
    %749 = vmatpush1.bf16.msra.mxu0 0
    %750 = vmatprep.subr.bf16.mxu0 0
    %751 = vmatpush1.bf16.msra.mxu0 0
    %752 = vmatprep.mubr.bf16.mxu0 0
    %753 = vmatmul.mubr.bf16.gmra.mrb[0].mxu0 %v678
    %v754 = vpop.f32.mrb[0].mxu0
    %v755 = vadd.f32 0.0, %v754
    %v756 = vpop.f32.mrb[0].mxu0
    %v757 = vpop.f32.mrb[0].mxu0
    %v758 = vpop.f32.mrb[0].mxu0
    %759 = vdwg.mxu0
    %s760 = scalar_lea.vmem [#allocation3], 96
    %v761 = vld [vmem:[%s760] sm:$0xff]
    %v762 = vld [vmem:[%s760 + $0x8] sm:$0xff]
    %v763 = vld [vmem:[%s760 + $0x10] sm:$0xff]
    %v764 = vadd.f32 %v761, %v714
    %v765 = vxor.u32 %v764, 2147483648
    %v766 = vmul.f32 %v765, 1.442695
    %v767 = vpow.pop %v766
    %v768 = vadd.f32 %v767, 1.0
    %v769 = vrcp.pop %v768
    %v770 = vmul.f32 1.0, %v769
    %v771 = vadd.f32 %v762, %v716
    %v772 = vxor.u32 %v771, 2147483648
    %v773 = vmul.f32 %v772, 1.442695
    %v774 = vpow.pop %v773
    %v775 = vadd.f32 %v774, 1.0
    %v776 = vrcp.pop %v775
    %v777 = vmul.f32 1.0, %v776
    %v778 = vadd.f32 %v755, %v114
    %v779 = vmul.f32 %v770, %v778
    %v780 = vadd.f32 %v763, %v779
    %v781 = vtanh.pop %v780
    %v782 = vsub.f32 %v675, %v781
    %v783 = vmul.f32 %v777, %v782
    %v784 = vadd.f32 %v781, %v783
    %s785 = scalar_lea.vmem [#allocation11], 32
    %786 = vst [vmem:[%s785] sm:$0xff] %v784
    %v787 = vpack.c.bf16 %v784, %v784
    %788 = vmatprep.subr.bf16.mxu0 %v198
    %789 = vmatpush1.bf16.msra.mxu0 %v197
    %790 = vmatprep.subr.bf16.mxu0 %v201
    %791 = vmatpush1.bf16.msra.mxu0 %v200
    %792 = vmatprep.subr.bf16.mxu0 %v204
    %793 = vmatpush1.bf16.msra.mxu0 %v203
    %794 = vmatprep.subr.bf16.mxu0 %v207
    %795 = vmatpush1.bf16.msra.mxu0 %v206
    %796 = vmatprep.subr.bf16.mxu0 %v210
    %797 = vmatpush1.bf16.msra.mxu0 %v209
    %798 = vmatprep.subr.bf16.mxu0 %v213
    %799 = vmatpush1.bf16.msra.mxu0 %v212
    %800 = vmatprep.subr.bf16.mxu0 %v216
    %801 = vmatpush1.bf16.msra.mxu0 %v215
    %802 = vmatprep.subr.bf16.mxu0 %v219
    %803 = vmatpush1.bf16.msra.mxu0 %v218
    %804 = vmatprep.subr.bf16.mxu0 0
    %805 = vmatpush1.bf16.msra.mxu0 0
    %806 = vmatprep.subr.bf16.mxu0 0
    %807 = vmatpush1.bf16.msra.mxu0 0
    %808 = vmatprep.subr.bf16.mxu0 0
    %809 = vmatpush1.bf16.msra.mxu0 0
    %810 = vmatprep.subr.bf16.mxu0 0
    %811 = vmatpush1.bf16.msra.mxu0 0
    %812 = vmatprep.subr.bf16.mxu0 0
    %813 = vmatpush1.bf16.msra.mxu0 0
    %814 = vmatprep.subr.bf16.mxu0 0
    %815 = vmatpush1.bf16.msra.mxu0 0
    %816 = vmatprep.subr.bf16.mxu0 0
    %817 = vmatpush1.bf16.msra.mxu0 0
    %818 = vmatprep.subr.bf16.mxu0 0
    %819 = vmatpush1.bf16.msra.mxu0 0
    %820 = vmatprep.mubr.bf16.mxu0 0
    %821 = vmatmul.mubr.bf16.gmra.mrb[0].mxu0 %v787
    %v822 = vpop.f32.mrb[0].mxu0
    %v823 = vadd.f32 0.0, %v822
    %v824 = vpop.f32.mrb[0].mxu0
    %v825 = vadd.f32 0.0, %v824
    %v826 = vpop.f32.mrb[0].mxu0
    %v827 = vpop.f32.mrb[0].mxu0
    %828 = vdwg.mxu0
    %829 = vmatprep.subr.bf16.mxu0 0
    %830 = vmatpush1.bf16.msra.mxu0 %v199
    %831 = vmatprep.subr.bf16.mxu0 0
    %832 = vmatpush1.bf16.msra.mxu0 %v202
    %833 = vmatprep.subr.bf16.mxu0 0
    %834 = vmatpush1.bf16.msra.mxu0 %v205
    %835 = vmatprep.subr.bf16.mxu0 0
    %836 = vmatpush1.bf16.msra.mxu0 %v208
    %837 = vmatprep.subr.bf16.mxu0 0
    %838 = vmatpush1.bf16.msra.mxu0 %v211
    %839 = vmatprep.subr.bf16.mxu0 0
    %840 = vmatpush1.bf16.msra.mxu0 %v214
    %841 = vmatprep.subr.bf16.mxu0 0
    %842 = vmatpush1.bf16.msra.mxu0 %v217
    %843 = vmatprep.subr.bf16.mxu0 0
    %844 = vmatpush1.bf16.msra.mxu0 %v220
    %845 = vmatprep.subr.bf16.mxu0 0
    %846 = vmatpush1.bf16.msra.mxu0 0
    %847 = vmatprep.subr.bf16.mxu0 0
    %848 = vmatpush1.bf16.msra.mxu0 0
    %849 = vmatprep.subr.bf16.mxu0 0
    %850 = vmatpush1.bf16.msra.mxu0 0
    %851 = vmatprep.subr.bf16.mxu0 0
    %852 = vmatpush1.bf16.msra.mxu0 0
    %853 = vmatprep.subr.bf16.mxu0 0
    %854 = vmatpush1.bf16.msra.mxu0 0
    %855 = vmatprep.subr.bf16.mxu0 0
    %856 = vmatpush1.bf16.msra.mxu0 0
    %857 = vmatprep.subr.bf16.mxu0 0
    %858 = vmatpush1.bf16.msra.mxu0 0
    %859 = vmatprep.subr.bf16.mxu0 0
    %860 = vmatpush1.bf16.msra.mxu0 0
    %861 = vmatprep.mubr.bf16.mxu0 0
    %862 = vmatmul.mubr.bf16.gmra.mrb[0].mxu0 %v787
    %v863 = vpop.f32.mrb[0].mxu0
    %v864 = vadd.f32 0.0, %v863
    %v865 = vpop.f32.mrb[0].mxu0
    %v866 = vpop.f32.mrb[0].mxu0
    %v867 = vpop.f32.mrb[0].mxu0
    %868 = vdwg.mxu0
    %s869 = scalar_lea.vmem [#allocation3], 120
    %v870 = vld [vmem:[%s869] sm:$0xff]
    %v871 = vld [vmem:[%s869 + $0x8] sm:$0xff]
    %v872 = vld [vmem:[%s869 + $0x10] sm:$0xff]
    %v873 = vadd.f32 %v870, %v823
    %v874 = vxor.u32 %v873, 2147483648
    %v875 = vmul.f32 %v874, 1.442695
    %v876 = vpow.pop %v875
    %v877 = vadd.f32 %v876, 1.0
    %v878 = vrcp.pop %v877
    %v879 = vmul.f32 1.0, %v878
    %v880 = vadd.f32 %v871, %v825
    %v881 = vxor.u32 %v880, 2147483648
    %v882 = vmul.f32 %v881, 1.442695
    %v883 = vpow.pop %v882
    %v884 = vadd.f32 %v883, 1.0
    %v885 = vrcp.pop %v884
    %v886 = vmul.f32 1.0, %v885
    %v887 = vadd.f32 %v864, %v114
    %v888 = vmul.f32 %v879, %v887
    %v889 = vadd.f32 %v872, %v888
    %v890 = vtanh.pop %v889
    %v891 = vsub.f32 %v784, %v890
    %v892 = vmul.f32 %v886, %v891
    %v893 = vadd.f32 %v890, %v892
    %s894 = scalar_lea.vmem [#allocation11], 40
    %895 = vst [vmem:[%s894] sm:$0xff] %v893
    %v896 = vpack.c.bf16 %v893, %v893
    %897 = vmatprep.subr.bf16.mxu0 %v198
    %898 = vmatpush1.bf16.msra.mxu0 %v197
    %899 = vmatprep.subr.bf16.mxu0 %v201
    %900 = vmatpush1.bf16.msra.mxu0 %v200
    %901 = vmatprep.subr.bf16.mxu0 %v204
    %902 = vmatpush1.bf16.msra.mxu0 %v203
    %903 = vmatprep.subr.bf16.mxu0 %v207
    %904 = vmatpush1.bf16.msra.mxu0 %v206
    %905 = vmatprep.subr.bf16.mxu0 %v210
    %906 = vmatpush1.bf16.msra.mxu0 %v209
    %907 = vmatprep.subr.bf16.mxu0 %v213
    %908 = vmatpush1.bf16.msra.mxu0 %v212
    %909 = vmatprep.subr.bf16.mxu0 %v216
    %910 = vmatpush1.bf16.msra.mxu0 %v215
    %911 = vmatprep.subr.bf16.mxu0 %v219
    %912 = vmatpush1.bf16.msra.mxu0 %v218
    %913 = vmatprep.subr.bf16.mxu0 0
    %914 = vmatpush1.bf16.msra.mxu0 0
    %915 = vmatprep.subr.bf16.mxu0 0
    %916 = vmatpush1.bf16.msra.mxu0 0
    %917 = vmatprep.subr.bf16.mxu0 0
    %918 = vmatpush1.bf16.msra.mxu0 0
    %919 = vmatprep.subr.bf16.mxu0 0
    %920 = vmatpush1.bf16.msra.mxu0 0
    %921 = vmatprep.subr.bf16.mxu0 0
    %922 = vmatpush1.bf16.msra.mxu0 0
    %923 = vmatprep.subr.bf16.mxu0 0
    %924 = vmatpush1.bf16.msra.mxu0 0
    %925 = vmatprep.subr.bf16.mxu0 0
    %926 = vmatpush1.bf16.msra.mxu0 0
    %927 = vmatprep.subr.bf16.mxu0 0
    %928 = vmatpush1.bf16.msra.mxu0 0
    %929 = vmatprep.mubr.bf16.mxu0 0
    %930 = vmatmul.mubr.bf16.gmra.mrb[0].mxu0 %v896
    %v931 = vpop.f32.mrb[0].mxu0
    %v932 = vadd.f32 0.0, %v931
    %v933 = vpop.f32.mrb[0].mxu0
    %v934 = vadd.f32 0.0, %v933
    %v935 = vpop.f32.mrb[0].mxu0
    %v936 = vpop.f32.mrb[0].mxu0
    %937 = vdwg.mxu0
    %938 = vmatprep.subr.bf16.mxu0 0
    %939 = vmatpush1.bf16.msra.mxu0 %v199
    %940 = vmatprep.subr.bf16.mxu0 0
    %941 = vmatpush1.bf16.msra.mxu0 %v202
    %942 = vmatprep.subr.bf16.mxu0 0
    %943 = vmatpush1.bf16.msra.mxu0 %v205
    %944 = vmatprep.subr.bf16.mxu0 0
    %945 = vmatpush1.bf16.msra.mxu0 %v208
    %946 = vmatprep.subr.bf16.mxu0 0
    %947 = vmatpush1.bf16.msra.mxu0 %v211
    %948 = vmatprep.subr.bf16.mxu0 0
    %949 = vmatpush1.bf16.msra.mxu0 %v214
    %950 = vmatprep.subr.bf16.mxu0 0
    %951 = vmatpush1.bf16.msra.mxu0 %v217
    %952 = vmatprep.subr.bf16.mxu0 0
    %953 = vmatpush1.bf16.msra.mxu0 %v220
    %954 = vmatprep.subr.bf16.mxu0 0
    %955 = vmatpush1.bf16.msra.mxu0 0
    %956 = vmatprep.subr.bf16.mxu0 0
    %957 = vmatpush1.bf16.msra.mxu0 0
    %958 = vmatprep.subr.bf16.mxu0 0
    %959 = vmatpush1.bf16.msra.mxu0 0
    %960 = vmatprep.subr.bf16.mxu0 0
    %961 = vmatpush1.bf16.msra.mxu0 0
    %962 = vmatprep.subr.bf16.mxu0 0
    %963 = vmatpush1.bf16.msra.mxu0 0
    %964 = vmatprep.subr.bf16.mxu0 0
    %965 = vmatpush1.bf16.msra.mxu0 0
    %966 = vmatprep.subr.bf16.mxu0 0
    %967 = vmatpush1.bf16.msra.mxu0 0
    %968 = vmatprep.subr.bf16.mxu0 0
    %969 = vmatpush1.bf16.msra.mxu0 0
    %970 = vmatprep.mubr.bf16.mxu0 0
    %971 = vmatmul.mubr.bf16.gmra.mrb[0].mxu0 %v896
    %v972 = vpop.f32.mrb[0].mxu0
    %v973 = vadd.f32 0.0, %v972
    %v974 = vpop.f32.mrb[0].mxu0
    %v975 = vpop.f32.mrb[0].mxu0
    %v976 = vpop.f32.mrb[0].mxu0
    %977 = vdwg.mxu0
    %s978 = scalar_lea.vmem [#allocation3], 144
    %v979 = vld [vmem:[%s978] sm:$0xff]
    %v980 = vld [vmem:[%s978 + $0x8] sm:$0xff]
    %v981 = vld [vmem:[%s978 + $0x10] sm:$0xff]
    %v982 = vadd.f32 %v979, %v932
    %v983 = vxor.u32 %v982, 2147483648
    %v984 = vmul.f32 %v983, 1.442695
    %v985 = vpow.pop %v984
    %v986 = vadd.f32 %v985, 1.0
    %v987 = vrcp.pop %v986
    %v988 = vmul.f32 1.0, %v987
    %v989 = vadd.f32 %v980, %v934
    %v990 = vxor.u32 %v989, 2147483648
    %v991 = vmul.f32 %v990, 1.442695
    %v992 = vpow.pop %v991
    %v993 = vadd.f32 %v992, 1.0
    %v994 = vrcp.pop %v993
    %v995 = vmul.f32 1.0, %v994
    %v996 = vadd.f32 %v973, %v114
    %v997 = vmul.f32 %v988, %v996
    %v998 = vadd.f32 %v981, %v997
    %v999 = vtanh.pop %v998
    %v1000 = vsub.f32 %v893, %v999
    %v1001 = vmul.f32 %v995, %v1000
    %v1002 = vadd.f32 %v999, %v1001
    %s1003 = scalar_lea.vmem [#allocation11], 48
    %1004 = vst [vmem:[%s1003] sm:$0xff] %v1002
    %v1005 = vpack.c.bf16 %v1002, %v1002
    %1006 = vmatprep.subr.bf16.mxu0 %v198
    %1007 = vmatpush1.bf16.msra.mxu0 %v197
    %1008 = vmatprep.subr.bf16.mxu0 %v201
    %1009 = vmatpush1.bf16.msra.mxu0 %v200
    %1010 = vmatprep.subr.bf16.mxu0 %v204
    %1011 = vmatpush1.bf16.msra.mxu0 %v203
    %1012 = vmatprep.subr.bf16.mxu0 %v207
    %1013 = vmatpush1.bf16.msra.mxu0 %v206
    %1014 = vmatprep.subr.bf16.mxu0 %v210
    %1015 = vmatpush1.bf16.msra.mxu0 %v209
    %1016 = vmatprep.subr.bf16.mxu0 %v213
    %1017 = vmatpush1.bf16.msra.mxu0 %v212
    %1018 = vmatprep.subr.bf16.mxu0 %v216
    %1019 = vmatpush1.bf16.msra.mxu0 %v215
    %1020 = vmatprep.subr.bf16.mxu0 %v219
    %1021 = vmatpush1.bf16.msra.mxu0 %v218
    %1022 = vmatprep.subr.bf16.mxu0 0
    %1023 = vmatpush1.bf16.msra.mxu0 0
    %1024 = vmatprep.subr.bf16.mxu0 0
    %1025 = vmatpush1.bf16.msra.mxu0 0
    %1026 = vmatprep.subr.bf16.mxu0 0
    %1027 = vmatpush1.bf16.msra.mxu0 0
    %1028 = vmatprep.subr.bf16.mxu0 0
    %1029 = vmatpush1.bf16.msra.mxu0 0
    %1030 = vmatprep.subr.bf16.mxu0 0
    %1031 = vmatpush1.bf16.msra.mxu0 0
    %1032 = vmatprep.subr.bf16.mxu0 0
    %1033 = vmatpush1.bf16.msra.mxu0 0
    %1034 = vmatprep.subr.bf16.mxu0 0
    %1035 = vmatpush1.bf16.msra.mxu0 0
    %1036 = vmatprep.subr.bf16.mxu0 0
    %1037 = vmatpush1.bf16.msra.mxu0 0
    %1038 = vmatprep.mubr.bf16.mxu0 0
    %1039 = vmatmul.mubr.bf16.gmra.mrb[0].mxu0 %v1005
    %v1040 = vpop.f32.mrb[0].mxu0
    %v1041 = vadd.f32 0.0, %v1040
    %v1042 = vpop.f32.mrb[0].mxu0
    %v1043 = vadd.f32 0.0, %v1042
    %v1044 = vpop.f32.mrb[0].mxu0
    %v1045 = vpop.f32.mrb[0].mxu0
    %1046 = vdwg.mxu0
    %1047 = vmatprep.subr.bf16.mxu0 0
    %1048 = vmatpush1.bf16.msra.mxu0 %v199
    %1049 = vmatprep.subr.bf16.mxu0 0
    %1050 = vmatpush1.bf16.msra.mxu0 %v202
    %1051 = vmatprep.subr.bf16.mxu0 0
    %1052 = vmatpush1.bf16.msra.mxu0 %v205
    %1053 = vmatprep.subr.bf16.mxu0 0
    %1054 = vmatpush1.bf16.msra.mxu0 %v208
    %1055 = vmatprep.subr.bf16.mxu0 0
    %1056 = vmatpush1.bf16.msra.mxu0 %v211
    %1057 = vmatprep.subr.bf16.mxu0 0
    %1058 = vmatpush1.bf16.msra.mxu0 %v214
    %1059 = vmatprep.subr.bf16.mxu0 0
    %1060 = vmatpush1.bf16.msra.mxu0 %v217
    %1061 = vmatprep.subr.bf16.mxu0 0
    %1062 = vmatpush1.bf16.msra.mxu0 %v220
    %1063 = vmatprep.subr.bf16.mxu0 0
    %1064 = vmatpush1.bf16.msra.mxu0 0
    %1065 = vmatprep.subr.bf16.mxu0 0
    %1066 = vmatpush1.bf16.msra.mxu0 0
    %1067 = vmatprep.subr.bf16.mxu0 0
    %1068 = vmatpush1.bf16.msra.mxu0 0
    %1069 = vmatprep.subr.bf16.mxu0 0
    %1070 = vmatpush1.bf16.msra.mxu0 0
    %1071 = vmatprep.subr.bf16.mxu0 0
    %1072 = vmatpush1.bf16.msra.mxu0 0
    %1073 = vmatprep.subr.bf16.mxu0 0
    %1074 = vmatpush1.bf16.msra.mxu0 0
    %1075 = vmatprep.subr.bf16.mxu0 0
    %1076 = vmatpush1.bf16.msra.mxu0 0
    %1077 = vmatprep.subr.bf16.mxu0 0
    %1078 = vmatpush1.bf16.msra.mxu0 0
    %1079 = vmatprep.mubr.bf16.mxu0 0
    %1080 = vmatmul.mubr.bf16.gmra.mrb[0].mxu0 %v1005
    %v1081 = vpop.f32.mrb[0].mxu0
    %v1082 = vadd.f32 0.0, %v1081
    %v1083 = vpop.f32.mrb[0].mxu0
    %v1084 = vpop.f32.mrb[0].mxu0
    %v1085 = vpop.f32.mrb[0].mxu0
    %1086 = vdwg.mxu0
    %s1087 = scalar_lea.vmem [#allocation3], 168
    %v1088 = vld [vmem:[%s1087] sm:$0xff]
    %v1089 = vld [vmem:[%s1087 + $0x8] sm:$0xff]
    %v1090 = vld [vmem:[%s1087 + $0x10] sm:$0xff]
    %v1091 = vadd.f32 %v1088, %v1041
    %v1092 = vxor.u32 %v1091, 2147483648
    %v1093 = vmul.f32 %v1092, 1.442695
    %v1094 = vpow.pop %v1093
    %v1095 = vadd.f32 %v1094, 1.0
    %v1096 = vrcp.pop %v1095
    %v1097 = vmul.f32 1.0, %v1096
    %v1098 = vadd.f32 %v1089, %v1043
    %v1099 = vxor.u32 %v1098, 2147483648
    %v1100 = vmul.f32 %v1099, 1.442695
    %v1101 = vpow.pop %v1100
    %v1102 = vadd.f32 %v1101, 1.0
    %v1103 = vrcp.pop %v1102
    %v1104 = vmul.f32 1.0, %v1103
    %v1105 = vadd.f32 %v1082, %v114
    %v1106 = vmul.f32 %v1097, %v1105
    %v1107 = vadd.f32 %v1090, %v1106
    %v1108 = vtanh.pop %v1107
    %v1109 = vsub.f32 %v1002, %v1108
    %v1110 = vmul.f32 %v1104, %v1109
    %v1111 = vadd.f32 %v1108, %v1110
    %s1112 = scalar_lea.vmem [#allocation11], 56
    %1113 = vst [vmem:[%s1112] sm:$0xff] %v1111
    %1114 = vst [vmem:[#allocation2] sm:$0xff] %v1111
    // Predicated region
    $region38: #{tpu_custom_call.1} parent=1 // pred_check
      _
    $region39: #{tpu_custom_call.1} parent=1 // pred_check_branch
      %1116 = sbr.rel (0) target = $region41
    $region40: #{tpu_custom_call.1} parent=1 // pred_region
      %s1118 = ssub.s32 1024, 1024
      %1119 = vsyncadd [#allocation5], %s1118
      %s1120 = sshll.u32 [#allocation11], 4
      %s1121 = int_to_ptr.vmem [resolvable:$true] %s1120
      %1126 = dma.vmem_to_hbm [thread:$0]  %s1121, 1024, %s4, [#allocation5], 128, 128, 8
    $region41: #{tpu_custom_call.1} parent=1 // pred_fallthru
      _
    // Predicated region
    $region42: #{tpu_custom_call.1} parent=1 // pred_check
      _
    $region43: #{tpu_custom_call.1} parent=1 // pred_check_branch
      %1128 = sbr.rel (0) target = $region45
    $region44: #{tpu_custom_call.1} parent=1 // pred_region
      %1129 = dma.done [#allocation5], 1024
    $region45: #{tpu_custom_call.1} parent=1 // pred_fallthru
      _
    %1130 = vsyncpa [#allocation4], 1
    %1131 = vsyncpa [#allocation7], 1
    %1132 = vsyncpa [#allocation10], 1
    %1133 = vsyncpa [#allocation5], 1

</llo_original>
